<compile_context>
chip_gen: v7x
topology: tpu7x:2x2x1
jax: 0.10.0
libtpu: 0.0.40
codegen_flags: <defaults>
</compile_context>

<pallas_src>
import functools

import jax
import jax.numpy as jnp
from jax.experimental import pallas as pl
from jax.experimental.pallas import tpu as pltpu


N_NODES = 256
IN_FEATURES = 128       # matches `torch.randn(num_nodes, 128)`
HIDDEN = 128            # must equal IN_FEATURES for the `h + inputs` residuals
FC_FEATURES = 128
NUM_CLASSES = 8


# --------------------------------------------------------------------------
# Fused kernel: 4x ( relu(A_hat @ H @ W_l + b_l) ) with residual input adds,
# then the FC head — one program, everything resident in VMEM, all f32.
# --------------------------------------------------------------------------
def _fused_gcn_kernel(a_ref, x_ref, w_ref, b_ref, out_ref):
    a = a_ref[...]          # (N, N) f32 normalized adjacency
    x = x_ref[...]          # (N, F) f32 input features

    def graph_conv(h, layer):
        # relu( A_hat @ H @ W_l + b_l ); static layer index into packed refs.
        agg = jnp.dot(a, h, preferred_element_type=jnp.float32)
        z = jnp.dot(agg, w_ref[layer], preferred_element_type=jnp.float32)
        return jnp.maximum(z + b_ref[layer], 0.0)     # b_ref[l]: (1, F) bcast

    h = graph_conv(x, 0)          # layer1 + relu (+ dropout == identity)
    h = graph_conv(h + x, 1)      # layer2 + relu
    h = graph_conv(h + x, 2)      # layer3 + relu
    h = graph_conv(h + x, 3)      # layer4 + relu

    # FC head (weight zero-padded to 128 lanes inside the packed slab);
    # store only the real NUM_CLASSES columns.
    logits = jnp.dot(h, w_ref[4], preferred_element_type=jnp.float32) + b_ref[4]
    out_ref[...] = logits[:, : out_ref.shape[1]]


# --------------------------------------------------------------------------
# Jitted forward: exactly one op (the fused pallas_call), no wrapper converts.
# --------------------------------------------------------------------------
@functools.partial(jax.jit, static_argnames=("num_classes",))
def gcn_forward(a_hat, x, w_packed, b_packed, *, num_classes=NUM_CLASSES):
    n, f = x.shape
    hidden = w_packed.shape[-1]

    flops = 4 * (2 * n * n * f + 2 * n * f * hidden) + 2 * n * f * hidden
    bytes_accessed = 4 * (a_hat.size + x.size + w_packed.size + b_packed.size
                          + n * num_classes)

    vmem = pl.BlockSpec(memory_space=pltpu.MemorySpace.VMEM)
    out = pl.pallas_call(
        _fused_gcn_kernel,
        out_shape=jax.ShapeDtypeStruct((n, num_classes), jnp.float32),
        in_specs=[vmem, vmem, vmem, vmem],
        out_specs=vmem,
        cost_estimate=pl.CostEstimate(
            flops=flops, transcendentals=0, bytes_accessed=bytes_accessed),
    )(a_hat, x, w_packed, b_packed)
    return jnp.squeeze(out)        # mirrors `h.squeeze()` (no-op at (N, C))


# --------------------------------------------------------------------------
# One-time (outside jit) parameter packing: 12 arrays -> 2 DMA-friendly slabs.
# --------------------------------------------------------------------------
def pack_params(params, hidden=HIDDEN, num_classes=NUM_CLASSES):
    wfc_pad = jnp.zeros((hidden, hidden), jnp.float32)
    wfc_pad = wfc_pad.at[:, :num_classes].set(params["wfc"])
    bfc_pad = jnp.zeros((hidden,), jnp.float32)
    bfc_pad = bfc_pad.at[:num_classes].set(params["bfc"])

    w_packed = jnp.stack(
        [params["w1"], params["w2"], params["w3"], params["w4"], wfc_pad]
    ).astype(jnp.float32)                                   # (5, 128, 128)
    b_packed = jnp.stack(
        [params["b1"], params["b2"], params["b3"], params["b4"], bfc_pad]
    ).astype(jnp.float32).reshape(5, 1, hidden)             # (5, 1, 128)
    return w_packed, b_packed


# --------------------------------------------------------------------------
# Pure-JAX full-precision reference (module semantics).
# --------------------------------------------------------------------------
def gcn_forward_ref(a_hat, x, params):
    hi = jax.lax.Precision.HIGHEST

    def mm(a, b):
        return jnp.dot(a, b, precision=hi)

    h = jax.nn.relu(mm(mm(a_hat, x), params["w1"]) + params["b1"])
    h = jax.nn.relu(mm(mm(a_hat, h + x), params["w2"]) + params["b2"])
    h = jax.nn.relu(mm(mm(a_hat, h + x), params["w3"]) + params["b3"])
    h = jax.nn.relu(mm(mm(a_hat, h + x), params["w4"]) + params["b4"])
    h = mm(h, params["wfc"]) + params["bfc"]
    return jnp.squeeze(h)


# --------------------------------------------------------------------------
# Deterministic graph + parameter construction.
# --------------------------------------------------------------------------
def build_norm_adj(n):
    """Ring graph + self loops, symmetric normalization (DGL norm='both')."""
    idx = jnp.arange(n)
    a = jnp.zeros((n, n), jnp.float32)
    a = a.at[idx, (idx + 1) % n].set(1.0)
    a = a.at[idx, (idx - 1) % n].set(1.0)
    a = a + jnp.eye(n, dtype=jnp.float32)            # dgl.add_self_loop
    deg = a.sum(axis=1)
    d_inv_sqrt = 1.0 / jnp.sqrt(deg)
    return a * d_inv_sqrt[:, None] * d_inv_sqrt[None, :]


def init_params(key, in_features, hidden_features, fc_features, num_classes):
    ks = jax.random.split(key, 6)

    def w(k, fan_in, fan_out):
        return jax.random.normal(k, (fan_in, fan_out), jnp.float32) / jnp.sqrt(fan_in)

    return {
        "w1": w(ks[0], in_features, hidden_features),
        "b1": jnp.zeros((hidden_features,), jnp.float32),
        "w2": w(ks[1], hidden_features, hidden_features),
        "b2": jnp.zeros((hidden_features,), jnp.float32),
        "w3": w(ks[2], hidden_features, hidden_features),
        "b3": jnp.zeros((hidden_features,), jnp.float32),
        "w4": w(ks[3], hidden_features, hidden_features),
        "b4": jnp.zeros((hidden_features,), jnp.float32),
        "wfc": w(ks[4], fc_features, num_classes),
        "bfc": jax.random.normal(ks[5], (num_classes,), jnp.float32) * 0.01,
    }


if __name__ == "__main__":
    key = jax.random.PRNGKey(0)
    k_x, k_p = jax.random.split(key)

    a_hat = build_norm_adj(N_NODES)
    x = jax.random.normal(k_x, (N_NODES, IN_FEATURES), jnp.float32)
    params = init_params(k_p, IN_FEATURES, HIDDEN, FC_FEATURES, NUM_CLASSES)

    # Pack once, outside the jitted forward (no per-call XLA prep kernels).
    w_packed, b_packed = pack_params(params)
    w_packed = jax.block_until_ready(w_packed)
    b_packed = jax.block_until_ready(b_packed)

    out = jax.block_until_ready(
        gcn_forward(a_hat, x, w_packed, b_packed, num_classes=NUM_CLASSES))
    assert out.shape == (N_NODES, NUM_CLASSES), out.shape

    # Compare against the full-precision module reference.  Tolerance is kept
    # generous enough to also cover a lower-precision MXU pass mode for f32
    # matmuls on some TPU generations; with exact f32 the error is ~1e-5.
    ref = gcn_forward_ref(a_hat, x, params)
    assert jnp.allclose(out, ref, atol=2e-1, rtol=5e-2), \
        "kernel output drifted too far from f32 reference"

    print("KERNEL_OK")
</pallas_src>

<mosaic_0001>
module attributes {stable_mosaic.version = 11 : i64} {
  func.func @_fused_gcn_kernel(%arg0: memref<256x256xf32, #tpu.memory_space<vmem>>, %arg1: memref<256x128xf32, #tpu.memory_space<vmem>>, %arg2: memref<5x128x128xf32, #tpu.memory_space<vmem>>, %arg3: memref<5x1x128xf32, #tpu.memory_space<vmem>>, %arg4: memref<256x8xf32, #tpu.memory_space<vmem>>) attributes {dimension_semantics = [], scalar_prefetch = 0 : i64, scratch_operands = 0 : i64, tpu.core_type = #tpu.core_type<tc>} {
    %c0 = arith.constant 0 : index
    %c0_0 = arith.constant 0 : index
    %0 = vector.load %arg0[%c0, %c0_0] : memref<256x256xf32, #tpu.memory_space<vmem>>, vector<256x256xf32>
    %c0_1 = arith.constant 0 : index
    %c0_2 = arith.constant 0 : index
    %1 = vector.load %arg1[%c0_1, %c0_2] : memref<256x128xf32, #tpu.memory_space<vmem>>, vector<256x128xf32>
    %cst = arith.constant dense<0.000000e+00> : vector<256x128xf32>
    %2 = tpu.matmul %0, %1, %cst {dimension_numbers = #tpu.dot_dimension_numbers<[1], [0], [0], [1], [0, 0, 1, 1], [], []>} : vector<256x256xf32>, vector<256x128xf32>, vector<256x128xf32> -> vector<256x128xf32>
    %c0_3 = arith.constant 0 : index
    %c0_4 = arith.constant 0 : index
    %c0_5 = arith.constant 0 : index
    %3 = vector.load %arg2[%c0_3, %c0_4, %c0_5] : memref<5x128x128xf32, #tpu.memory_space<vmem>>, vector<1x128x128xf32>
    %4 = vector.shape_cast %3 : vector<1x128x128xf32> to vector<128x128xf32>
    %cst_6 = arith.constant dense<0.000000e+00> : vector<256x128xf32>
    %5 = tpu.matmul %2, %4, %cst_6 {dimension_numbers = #tpu.dot_dimension_numbers<[1], [0], [0], [1], [0, 0, 1, 1], [], []>} : vector<256x128xf32>, vector<128x128xf32>, vector<256x128xf32> -> vector<256x128xf32>
    %c0_7 = arith.constant 0 : index
    %c0_8 = arith.constant 0 : index
    %c0_9 = arith.constant 0 : index
    %6 = vector.load %arg3[%c0_7, %c0_8, %c0_9] : memref<5x1x128xf32, #tpu.memory_space<vmem>>, vector<1x1x128xf32>
    %7 = vector.shape_cast %6 : vector<1x1x128xf32> to vector<1x128xf32>
    %8 = vector.broadcast %7 : vector<1x128xf32> to vector<256x128xf32>
    %9 = arith.addf %5, %8 : vector<256x128xf32>
    %cst_10 = arith.constant 0.000000e+00 : f32
    %10 = vector.broadcast %cst_10 : f32 to vector<256x128xf32>
    %11 = arith.maximumf %9, %10 : vector<256x128xf32>
    %12 = arith.addf %11, %1 : vector<256x128xf32>
    %cst_11 = arith.constant dense<0.000000e+00> : vector<256x128xf32>
    %13 = tpu.matmul %0, %12, %cst_11 {dimension_numbers = #tpu.dot_dimension_numbers<[1], [0], [0], [1], [0, 0, 1, 1], [], []>} : vector<256x256xf32>, vector<256x128xf32>, vector<256x128xf32> -> vector<256x128xf32>
    %c1 = arith.constant 1 : index
    %c0_12 = arith.constant 0 : index
    %c0_13 = arith.constant 0 : index
    %14 = vector.load %arg2[%c1, %c0_12, %c0_13] : memref<5x128x128xf32, #tpu.memory_space<vmem>>, vector<1x128x128xf32>
    %15 = vector.shape_cast %14 : vector<1x128x128xf32> to vector<128x128xf32>
    %cst_14 = arith.constant dense<0.000000e+00> : vector<256x128xf32>
    %16 = tpu.matmul %13, %15, %cst_14 {dimension_numbers = #tpu.dot_dimension_numbers<[1], [0], [0], [1], [0, 0, 1, 1], [], []>} : vector<256x128xf32>, vector<128x128xf32>, vector<256x128xf32> -> vector<256x128xf32>
    %c1_15 = arith.constant 1 : index
    %c0_16 = arith.constant 0 : index
    %c0_17 = arith.constant 0 : index
    %17 = vector.load %arg3[%c1_15, %c0_16, %c0_17] : memref<5x1x128xf32, #tpu.memory_space<vmem>>, vector<1x1x128xf32>
    %18 = vector.shape_cast %17 : vector<1x1x128xf32> to vector<1x128xf32>
    %19 = vector.broadcast %18 : vector<1x128xf32> to vector<256x128xf32>
    %20 = arith.addf %16, %19 : vector<256x128xf32>
    %cst_18 = arith.constant 0.000000e+00 : f32
    %21 = vector.broadcast %cst_18 : f32 to vector<256x128xf32>
    %22 = arith.maximumf %20, %21 : vector<256x128xf32>
    %23 = arith.addf %22, %1 : vector<256x128xf32>
    %cst_19 = arith.constant dense<0.000000e+00> : vector<256x128xf32>
    %24 = tpu.matmul %0, %23, %cst_19 {dimension_numbers = #tpu.dot_dimension_numbers<[1], [0], [0], [1], [0, 0, 1, 1], [], []>} : vector<256x256xf32>, vector<256x128xf32>, vector<256x128xf32> -> vector<256x128xf32>
    %c2 = arith.constant 2 : index
    %c0_20 = arith.constant 0 : index
    %c0_21 = arith.constant 0 : index
    %25 = vector.load %arg2[%c2, %c0_20, %c0_21] : memref<5x128x128xf32, #tpu.memory_space<vmem>>, vector<1x128x128xf32>
    %26 = vector.shape_cast %25 : vector<1x128x128xf32> to vector<128x128xf32>
    %cst_22 = arith.constant dense<0.000000e+00> : vector<256x128xf32>
    %27 = tpu.matmul %24, %26, %cst_22 {dimension_numbers = #tpu.dot_dimension_numbers<[1], [0], [0], [1], [0, 0, 1, 1], [], []>} : vector<256x128xf32>, vector<128x128xf32>, vector<256x128xf32> -> vector<256x128xf32>
    %c2_23 = arith.constant 2 : index
    %c0_24 = arith.constant 0 : index
    %c0_25 = arith.constant 0 : index
    %28 = vector.load %arg3[%c2_23, %c0_24, %c0_25] : memref<5x1x128xf32, #tpu.memory_space<vmem>>, vector<1x1x128xf32>
    %29 = vector.shape_cast %28 : vector<1x1x128xf32> to vector<1x128xf32>
    %30 = vector.broadcast %29 : vector<1x128xf32> to vector<256x128xf32>
    %31 = arith.addf %27, %30 : vector<256x128xf32>
    %cst_26 = arith.constant 0.000000e+00 : f32
    %32 = vector.broadcast %cst_26 : f32 to vector<256x128xf32>
    %33 = arith.maximumf %31, %32 : vector<256x128xf32>
    %34 = arith.addf %33, %1 : vector<256x128xf32>
    %cst_27 = arith.constant dense<0.000000e+00> : vector<256x128xf32>
    %35 = tpu.matmul %0, %34, %cst_27 {dimension_numbers = #tpu.dot_dimension_numbers<[1], [0], [0], [1], [0, 0, 1, 1], [], []>} : vector<256x256xf32>, vector<256x128xf32>, vector<256x128xf32> -> vector<256x128xf32>
    %c3 = arith.constant 3 : index
    %c0_28 = arith.constant 0 : index
    %c0_29 = arith.constant 0 : index
    %36 = vector.load %arg2[%c3, %c0_28, %c0_29] : memref<5x128x128xf32, #tpu.memory_space<vmem>>, vector<1x128x128xf32>
    %37 = vector.shape_cast %36 : vector<1x128x128xf32> to vector<128x128xf32>
    %cst_30 = arith.constant dense<0.000000e+00> : vector<256x128xf32>
    %38 = tpu.matmul %35, %37, %cst_30 {dimension_numbers = #tpu.dot_dimension_numbers<[1], [0], [0], [1], [0, 0, 1, 1], [], []>} : vector<256x128xf32>, vector<128x128xf32>, vector<256x128xf32> -> vector<256x128xf32>
    %c3_31 = arith.constant 3 : index
    %c0_32 = arith.constant 0 : index
    %c0_33 = arith.constant 0 : index
    %39 = vector.load %arg3[%c3_31, %c0_32, %c0_33] : memref<5x1x128xf32, #tpu.memory_space<vmem>>, vector<1x1x128xf32>
    %40 = vector.shape_cast %39 : vector<1x1x128xf32> to vector<1x128xf32>
    %41 = vector.broadcast %40 : vector<1x128xf32> to vector<256x128xf32>
    %42 = arith.addf %38, %41 : vector<256x128xf32>
    %cst_34 = arith.constant 0.000000e+00 : f32
    %43 = vector.broadcast %cst_34 : f32 to vector<256x128xf32>
    %44 = arith.maximumf %42, %43 : vector<256x128xf32>
    %c4 = arith.constant 4 : index
    %c0_35 = arith.constant 0 : index
    %c0_36 = arith.constant 0 : index
    %45 = vector.load %arg2[%c4, %c0_35, %c0_36] : memref<5x128x128xf32, #tpu.memory_space<vmem>>, vector<1x128x128xf32>
    %46 = vector.shape_cast %45 : vector<1x128x128xf32> to vector<128x128xf32>
    %cst_37 = arith.constant dense<0.000000e+00> : vector<256x128xf32>
    %47 = tpu.matmul %44, %46, %cst_37 {dimension_numbers = #tpu.dot_dimension_numbers<[1], [0], [0], [1], [0, 0, 1, 1], [], []>} : vector<256x128xf32>, vector<128x128xf32>, vector<256x128xf32> -> vector<256x128xf32>
    %c4_38 = arith.constant 4 : index
    %c0_39 = arith.constant 0 : index
    %c0_40 = arith.constant 0 : index
    %48 = vector.load %arg3[%c4_38, %c0_39, %c0_40] : memref<5x1x128xf32, #tpu.memory_space<vmem>>, vector<1x1x128xf32>
    %49 = vector.shape_cast %48 : vector<1x1x128xf32> to vector<1x128xf32>
    %50 = vector.broadcast %49 : vector<1x128xf32> to vector<256x128xf32>
    %51 = arith.addf %47, %50 : vector<256x128xf32>
    %52 = vector.extract_strided_slice %51 {offsets = [0, 0], sizes = [256, 8], strides = [1, 1]} : vector<256x128xf32> to vector<256x8xf32>
    %c0_41 = arith.constant 0 : index
    %c0_42 = arith.constant 0 : index
    %53 = vector.load %arg4[%c0_41, %c0_42] : memref<256x8xf32, #tpu.memory_space<vmem>>, vector<256x8xf32>
    tpu.vector_store %arg4[%c0_41, %c0_42], %52 {strides = array<i32>} : memref<256x8xf32, #tpu.memory_space<vmem>>, vector<256x8xf32>,
    return
  }
}

</mosaic_0001>

<llo_original>
// kernel: gcn_forward.1
$region0: #{gcn_forward.1}
  #allocation0 [shape = 'u32[]', space=smem, size = 0x4, offset = 0x4, fixed_abs, tag = 'smem constant byte address 0x4 - core index']
  #allocation1 [shape = 'u32[144,128]{1,0:T(1,128)}', space=vmem, size = 0x12000, scoped, tag = 'internal scratch']
  %s0 = inlined_call_operand.hbm [shape: f32[256,256], index: 0, kind: input, shape index: {}]
  %s1 = inlined_call_operand.hbm [shape: f32[256,128], index: 1, kind: input, shape index: {}]
  %s2 = inlined_call_operand.hbm [shape: f32[5,128,128], index: 2, kind: input, shape index: {}]
  %s3 = inlined_call_operand.vmem [shape: f32[5,1,128], index: 3, kind: input, shape index: {}]
  %s4 = inlined_call_operand.vmem [shape: f32[256,8], index: 4, kind: output, shape index: {}]
  %s5 = sld [smem:[#allocation0]]
  $region38: #{gcn_forward.1} parent=0
    _
  %s7 = ssub.s32 1, %s5
  %s8 = scalar_select 0, %s7, %s5
  $region1: #{gcn_forward.1} parent=0
    #allocation2 [shape = 'u8[262144]{0}', space=vmem, size = 0x40000, scoped, tag = 'input window, operand 0, single buffered']
    #allocation3 [shape = 's32[1]{0}', space=sflag, size = 0x4, scoped, tag = 'scoped memory for gcn_forward.1']
    #allocation4 [shape = 'u8[131072]{0}', space=vmem, size = 0x20000, scoped, tag = 'input window, operand 1, single buffered']
    #allocation5 [shape = 's32[1]{0}', space=sflag, size = 0x4, scoped, tag = 'scoped memory for gcn_forward.1']
    #allocation6 [shape = 'u8[327680]{0}', space=vmem, size = 0x50000, scoped, tag = 'input window, operand 2, single buffered']
    %9 = vsyncpa [#allocation3], 0
    %10 = vsyncpa [#allocation5], 0
    // Predicated region
    $region2: #{gcn_forward.1} parent=1 // pred_check
      _
    $region3: #{gcn_forward.1} parent=1 // pred_check_branch
      %12 = sbr.rel (0) target = $region5
    $region4: #{gcn_forward.1} parent=1 // pred_region
      %s14 = ssub.s32 8192, 8192
      %15 = vsyncadd [#allocation3], %s14
      %s16 = sshll.u32 [#allocation2], 4
      %s17 = int_to_ptr.vmem [resolvable:$true] %s16
      %22 = dma.hbm_to_vmem [thread:$0]  %s0, 8192, %s17, [#allocation3], 256, 256, 16
    $region5: #{gcn_forward.1} parent=1 // pred_fallthru
      _
    // Predicated region
    $region6: #{gcn_forward.1} parent=1 // pred_check
      _
    $region7: #{gcn_forward.1} parent=1 // pred_check_branch
      %24 = sbr.rel (0) target = $region9
    $region8: #{gcn_forward.1} parent=1 // pred_region
      %s26 = ssub.s32 4096, 4096
      %27 = vsyncadd [#allocation5], %s26
      %s28 = sshll.u32 [#allocation4], 4
      %s29 = int_to_ptr.vmem [resolvable:$true] %s28
      %34 = dma.hbm_to_vmem [thread:$0]  %s1, 4096, %s29, [#allocation5], 128, 128, 8
    $region9: #{gcn_forward.1} parent=1 // pred_fallthru
      _
    // Predicated region
    $region10: #{gcn_forward.1} parent=1 // pred_check
      _
    $region11: #{gcn_forward.1} parent=1 // pred_check_branch
      %36 = sbr.rel (0) target = $region13
    $region12: #{gcn_forward.1} parent=1 // pred_region
      %s38 = ssub.s32 10240, 10240
      %39 = vsyncadd [#allocation5], %s38
      %s40 = sshll.u32 [#allocation6], 4
      %s41 = int_to_ptr.vmem [resolvable:$true] %s40
      %46 = dma.hbm_to_vmem [thread:$0]  %s2, 10240, %s41, [#allocation5], 128, 128, 8
    $region13: #{gcn_forward.1} parent=1 // pred_fallthru
      _
    // Predicated region
    $region14: #{gcn_forward.1} parent=1 // pred_check
      _
    $region15: #{gcn_forward.1} parent=1 // pred_check_branch
      %48 = sbr.rel (0) target = $region17
    $region16: #{gcn_forward.1} parent=1 // pred_region
      _
    $region17: #{gcn_forward.1} parent=1 // pred_fallthru
      _
    // Predicated region
    $region18: #{gcn_forward.1} parent=1 // pred_check
      _
    $region19: #{gcn_forward.1} parent=1 // pred_check_branch
      %50 = sbr.rel (0) target = $region21
    $region20: #{gcn_forward.1} parent=1 // pred_region
      %51 = dma.done [#allocation3], 8192
    $region21: #{gcn_forward.1} parent=1 // pred_fallthru
      _
    // Predicated region
    $region22: #{gcn_forward.1} parent=1 // pred_check
      _
    $region23: #{gcn_forward.1} parent=1 // pred_check_branch
      %53 = sbr.rel (0) target = $region25
    $region24: #{gcn_forward.1} parent=1 // pred_region
      %54 = dma.done [#allocation5], 4096
    $region25: #{gcn_forward.1} parent=1 // pred_fallthru
      _
    // Predicated region
    $region26: #{gcn_forward.1} parent=1 // pred_check
      _
    $region27: #{gcn_forward.1} parent=1 // pred_check_branch
      %56 = sbr.rel (0) target = $region29
    $region28: #{gcn_forward.1} parent=1 // pred_region
      %57 = dma.done [#allocation5], 10240
    $region29: #{gcn_forward.1} parent=1 // pred_fallthru
      _
    %v58 = vld [vmem:[#allocation2] sm:$0xff]
    %v59 = vld [vmem:[#allocation2 + $0x8] sm:$0xff]
    %v60 = vld [vmem:[#allocation2 + $0x10] sm:$0xff]
    %v61 = vld [vmem:[#allocation2 + $0x18] sm:$0xff]
    %v62 = vld [vmem:[#allocation2 + $0x20] sm:$0xff]
    %v63 = vld [vmem:[#allocation2 + $0x28] sm:$0xff]
    %v64 = vld [vmem:[#allocation2 + $0x30] sm:$0xff]
    %v65 = vld [vmem:[#allocation2 + $0x38] sm:$0xff]
    %v66 = vld [vmem:[#allocation2 + $0x40] sm:$0xff]
    %v67 = vld [vmem:[#allocation2 + $0x48] sm:$0xff]
    %v68 = vld [vmem:[#allocation2 + $0x50] sm:$0xff]
    %v69 = vld [vmem:[#allocation2 + $0x58] sm:$0xff]
    %v70 = vld [vmem:[#allocation2 + $0x60] sm:$0xff]
    %v71 = vld [vmem:[#allocation2 + $0x68] sm:$0xff]
    %v72 = vld [vmem:[#allocation2 + $0x70] sm:$0xff]
    %v73 = vld [vmem:[#allocation2 + $0x78] sm:$0xff]
    %v74 = vld [vmem:[#allocation2 + $0x80] sm:$0xff]
    %v75 = vld [vmem:[#allocation2 + $0x88] sm:$0xff]
    %v76 = vld [vmem:[#allocation2 + $0x90] sm:$0xff]
    %v77 = vld [vmem:[#allocation2 + $0x98] sm:$0xff]
    %v78 = vld [vmem:[#allocation2 + $0xa0] sm:$0xff]
    %v79 = vld [vmem:[#allocation2 + $0xa8] sm:$0xff]
    %v80 = vld [vmem:[#allocation2 + $0xb0] sm:$0xff]
    %v81 = vld [vmem:[#allocation2 + $0xb8] sm:$0xff]
    %v82 = vld [vmem:[#allocation2 + $0xc0] sm:$0xff]
    %v83 = vld [vmem:[#allocation2 + $0xc8] sm:$0xff]
    %v84 = vld [vmem:[#allocation2 + $0xd0] sm:$0xff]
    %v85 = vld [vmem:[#allocation2 + $0xd8] sm:$0xff]
    %v86 = vld [vmem:[#allocation2 + $0xe0] sm:$0xff]
    %v87 = vld [vmem:[#allocation2 + $0xe8] sm:$0xff]
    %v88 = vld [vmem:[#allocation2 + $0xf0] sm:$0xff]
    %v89 = vld [vmem:[#allocation2 + $0xf8] sm:$0xff]
    %v90 = vld [vmem:[#allocation2 + $0x100] sm:$0xff]
    %v91 = vld [vmem:[#allocation2 + $0x108] sm:$0xff]
    %v92 = vld [vmem:[#allocation2 + $0x110] sm:$0xff]
    %v93 = vld [vmem:[#allocation2 + $0x118] sm:$0xff]
    %v94 = vld [vmem:[#allocation2 + $0x120] sm:$0xff]
    %v95 = vld [vmem:[#allocation2 + $0x128] sm:$0xff]
    %v96 = vld [vmem:[#allocation2 + $0x130] sm:$0xff]
    %v97 = vld [vmem:[#allocation2 + $0x138] sm:$0xff]
    %v98 = vld [vmem:[#allocation2 + $0x140] sm:$0xff]
    %v99 = vld [vmem:[#allocation2 + $0x148] sm:$0xff]
    %v100 = vld [vmem:[#allocation2 + $0x150] sm:$0xff]
    %v101 = vld [vmem:[#allocation2 + $0x158] sm:$0xff]
    %v102 = vld [vmem:[#allocation2 + $0x160] sm:$0xff]
    %v103 = vld [vmem:[#allocation2 + $0x168] sm:$0xff]
    %v104 = vld [vmem:[#allocation2 + $0x170] sm:$0xff]
    %v105 = vld [vmem:[#allocation2 + $0x178] sm:$0xff]
    %v106 = vld [vmem:[#allocation2 + $0x180] sm:$0xff]
    %v107 = vld [vmem:[#allocation2 + $0x188] sm:$0xff]
    %v108 = vld [vmem:[#allocation2 + $0x190] sm:$0xff]
    %v109 = vld [vmem:[#allocation2 + $0x198] sm:$0xff]
    %v110 = vld [vmem:[#allocation2 + $0x1a0] sm:$0xff]
    %v111 = vld [vmem:[#allocation2 + $0x1a8] sm:$0xff]
    %v112 = vld [vmem:[#allocation2 + $0x1b0] sm:$0xff]
    %v113 = vld [vmem:[#allocation2 + $0x1b8] sm:$0xff]
    %v114 = vld [vmem:[#allocation2 + $0x1c0] sm:$0xff]
    %v115 = vld [vmem:[#allocation2 + $0x1c8] sm:$0xff]
    %v116 = vld [vmem:[#allocation2 + $0x1d0] sm:$0xff]
    %v117 = vld [vmem:[#allocation2 + $0x1d8] sm:$0xff]
    %v118 = vld [vmem:[#allocation2 + $0x1e0] sm:$0xff]
    %v119 = vld [vmem:[#allocation2 + $0x1e8] sm:$0xff]
    %v120 = vld [vmem:[#allocation2 + $0x1f0] sm:$0xff]
    %v121 = vld [vmem:[#allocation2 + $0x1f8] sm:$0xff]
    %v122 = vld [vmem:[#allocation4] sm:$0xff]
    %v123 = vld [vmem:[#allocation4 + $0x8] sm:$0xff]
    %v124 = vld [vmem:[#allocation4 + $0x10] sm:$0xff]
    %v125 = vld [vmem:[#allocation4 + $0x18] sm:$0xff]
    %v126 = vld [vmem:[#allocation4 + $0x20] sm:$0xff]
    %v127 = vld [vmem:[#allocation4 + $0x28] sm:$0xff]
    %v128 = vld [vmem:[#allocation4 + $0x30] sm:$0xff]
    %v129 = vld [vmem:[#allocation4 + $0x38] sm:$0xff]
    %v130 = vld [vmem:[#allocation4 + $0x40] sm:$0xff]
    %v131 = vld [vmem:[#allocation4 + $0x48] sm:$0xff]
    %v132 = vld [vmem:[#allocation4 + $0x50] sm:$0xff]
    %v133 = vld [vmem:[#allocation4 + $0x58] sm:$0xff]
    %v134 = vld [vmem:[#allocation4 + $0x60] sm:$0xff]
    %v135 = vld [vmem:[#allocation4 + $0x68] sm:$0xff]
    %v136 = vld [vmem:[#allocation4 + $0x70] sm:$0xff]
    %v137 = vld [vmem:[#allocation4 + $0x78] sm:$0xff]
    %v138 = vld [vmem:[#allocation4 + $0x80] sm:$0xff]
    %v139 = vld [vmem:[#allocation4 + $0x88] sm:$0xff]
    %v140 = vld [vmem:[#allocation4 + $0x90] sm:$0xff]
    %v141 = vld [vmem:[#allocation4 + $0x98] sm:$0xff]
    %v142 = vld [vmem:[#allocation4 + $0xa0] sm:$0xff]
    %v143 = vld [vmem:[#allocation4 + $0xa8] sm:$0xff]
    %v144 = vld [vmem:[#allocation4 + $0xb0] sm:$0xff]
    %v145 = vld [vmem:[#allocation4 + $0xb8] sm:$0xff]
    %v146 = vld [vmem:[#allocation4 + $0xc0] sm:$0xff]
    %v147 = vld [vmem:[#allocation4 + $0xc8] sm:$0xff]
    %v148 = vld [vmem:[#allocation4 + $0xd0] sm:$0xff]
    %v149 = vld [vmem:[#allocation4 + $0xd8] sm:$0xff]
    %v150 = vld [vmem:[#allocation4 + $0xe0] sm:$0xff]
    %v151 = vld [vmem:[#allocation4 + $0xe8] sm:$0xff]
    %v152 = vld [vmem:[#allocation4 + $0xf0] sm:$0xff]
    %v153 = vld [vmem:[#allocation4 + $0xf8] sm:$0xff]
    %154 = vmatprep.subr.mxu0 0.0
    %155 = vmatpush1.msra.mxu0 %v122
    %156 = vmatprep.subr.mxu0 0.0
    %157 = vmatpush1.msra.mxu0 %v123
    %158 = vmatprep.subr.mxu0 0.0
    %159 = vmatpush1.msra.mxu0 %v124
    %160 = vmatprep.subr.mxu0 0.0
    %161 = vmatpush1.msra.mxu0 %v125
    %162 = vmatprep.subr.mxu0 0.0
    %163 = vmatpush1.msra.mxu0 %v126
    %164 = vmatprep.subr.mxu0 0.0
    %165 = vmatpush1.msra.mxu0 %v127
    %166 = vmatprep.subr.mxu0 0.0
    %167 = vmatpush1.msra.mxu0 %v128
    %168 = vmatprep.subr.mxu0 0.0
    %169 = vmatpush1.msra.mxu0 %v129
    %170 = vmatprep.subr.mxu0 0.0
    %171 = vmatpush1.msra.mxu0 %v130
    %172 = vmatprep.subr.mxu0 0.0
    %173 = vmatpush1.msra.mxu0 %v131
    %174 = vmatprep.subr.mxu0 0.0
    %175 = vmatpush1.msra.mxu0 %v132
    %176 = vmatprep.subr.mxu0 0.0
    %177 = vmatpush1.msra.mxu0 %v133
    %178 = vmatprep.subr.mxu0 0.0
    %179 = vmatpush1.msra.mxu0 %v134
    %180 = vmatprep.subr.mxu0 0.0
    %181 = vmatpush1.msra.mxu0 %v135
    %182 = vmatprep.subr.mxu0 0.0
    %183 = vmatpush1.msra.mxu0 %v136
    %184 = vmatprep.subr.mxu0 0.0
    %185 = vmatpush1.msra.mxu0 %v137
    %186 = vmatprep.subr.mxu0 0.0
    %187 = vmatpush1.msra.mxu0 %v138
    %188 = vmatprep.subr.mxu0 0.0
    %189 = vmatpush1.msra.mxu0 %v139
    %190 = vmatprep.subr.mxu0 0.0
    %191 = vmatpush1.msra.mxu0 %v140
    %192 = vmatprep.subr.mxu0 0.0
    %193 = vmatpush1.msra.mxu0 %v141
    %194 = vmatprep.subr.mxu0 0.0
    %195 = vmatpush1.msra.mxu0 %v142
    %196 = vmatprep.subr.mxu0 0.0
    %197 = vmatpush1.msra.mxu0 %v143
    %198 = vmatprep.subr.mxu0 0.0
    %199 = vmatpush1.msra.mxu0 %v144
    %200 = vmatprep.subr.mxu0 0.0
    %201 = vmatpush1.msra.mxu0 %v145
    %202 = vmatprep.subr.mxu0 0.0
    %203 = vmatpush1.msra.mxu0 %v146
    %204 = vmatprep.subr.mxu0 0.0
    %205 = vmatpush1.msra.mxu0 %v147
    %206 = vmatprep.subr.mxu0 0.0
    %207 = vmatpush1.msra.mxu0 %v148
    %208 = vmatprep.subr.mxu0 0.0
    %209 = vmatpush1.msra.mxu0 %v149
    %210 = vmatprep.subr.mxu0 0.0
    %211 = vmatpush1.msra.mxu0 %v150
    %212 = vmatprep.subr.mxu0 0.0
    %213 = vmatpush1.msra.mxu0 %v151
    %214 = vmatprep.subr.mxu0 0.0
    %215 = vmatpush1.msra.mxu0 %v152
    %216 = vmatprep.subr.mxu0 0.0
    %217 = vmatpush1.msra.mxu0 %v153
    %218 = vmatprep.mubr.f32.mxu0 %v59
    %219 = vmatmul.mubr.f32.gmra.mrb[0].mxu0 %v58
    %v220 = vpop.f32.mrb[0].mxu0
    %v221 = vadd.f32 0.0, %v220
    %v222 = vpop.f32.mrb[0].mxu0
    %223 = vmatprep.mubr.f32.mxu0 %v61
    %224 = vmatmul.mubr.f32.gmra.mrb[0].mxu0 %v60
    %v225 = vpop.f32.mrb[0].mxu0
    %v226 = vadd.f32 0.0, %v225
    %v227 = vpop.f32.mrb[0].mxu0
    %228 = vmatprep.mubr.f32.mxu0 %v63
    %229 = vmatmul.mubr.f32.gmra.mrb[0].mxu0 %v62
    %v230 = vpop.f32.mrb[0].mxu0
    %v231 = vadd.f32 0.0, %v230
    %v232 = vpop.f32.mrb[0].mxu0
    %233 = vmatprep.mubr.f32.mxu0 %v65
    %234 = vmatmul.mubr.f32.gmra.mrb[0].mxu0 %v64
    %v235 = vpop.f32.mrb[0].mxu0
    %v236 = vadd.f32 0.0, %v235
    %v237 = vpop.f32.mrb[0].mxu0
    %238 = vmatprep.mubr.f32.mxu0 %v67
    %239 = vmatmul.mubr.f32.gmra.mrb[0].mxu0 %v66
    %v240 = vpop.f32.mrb[0].mxu0
    %v241 = vadd.f32 0.0, %v240
    %v242 = vpop.f32.mrb[0].mxu0
    %243 = vmatprep.mubr.f32.mxu0 %v69
    %244 = vmatmul.mubr.f32.gmra.mrb[0].mxu0 %v68
    %v245 = vpop.f32.mrb[0].mxu0
    %v246 = vadd.f32 0.0, %v245
    %v247 = vpop.f32.mrb[0].mxu0
    %248 = vmatprep.mubr.f32.mxu0 %v71
    %249 = vmatmul.mubr.f32.gmra.mrb[0].mxu0 %v70
    %v250 = vpop.f32.mrb[0].mxu0
    %v251 = vadd.f32 0.0, %v250
    %v252 = vpop.f32.mrb[0].mxu0
    %253 = vmatprep.mubr.f32.mxu0 %v73
    %254 = vmatmul.mubr.f32.gmra.mrb[0].mxu0 %v72
    %v255 = vpop.f32.mrb[0].mxu0
    %v256 = vadd.f32 0.0, %v255
    %v257 = vpop.f32.mrb[0].mxu0
    %258 = vmatprep.mubr.f32.mxu0 %v75
    %259 = vmatmul.mubr.f32.gmra.mrb[0].mxu0 %v74
    %v260 = vpop.f32.mrb[0].mxu0
    %v261 = vadd.f32 0.0, %v260
    %v262 = vpop.f32.mrb[0].mxu0
    %263 = vmatprep.mubr.f32.mxu0 %v77
    %264 = vmatmul.mubr.f32.gmra.mrb[0].mxu0 %v76
    %v265 = vpop.f32.mrb[0].mxu0
    %v266 = vadd.f32 0.0, %v265
    %v267 = vpop.f32.mrb[0].mxu0
    %268 = vmatprep.mubr.f32.mxu0 %v79
    %269 = vmatmul.mubr.f32.gmra.mrb[0].mxu0 %v78
    %v270 = vpop.f32.mrb[0].mxu0
    %v271 = vadd.f32 0.0, %v270
    %v272 = vpop.f32.mrb[0].mxu0
    %273 = vmatprep.mubr.f32.mxu0 %v81
    %274 = vmatmul.mubr.f32.gmra.mrb[0].mxu0 %v80
    %v275 = vpop.f32.mrb[0].mxu0
    %v276 = vadd.f32 0.0, %v275
    %v277 = vpop.f32.mrb[0].mxu0
    %278 = vmatprep.mubr.f32.mxu0 %v83
    %279 = vmatmul.mubr.f32.gmra.mrb[0].mxu0 %v82
    %v280 = vpop.f32.mrb[0].mxu0
    %v281 = vadd.f32 0.0, %v280
    %v282 = vpop.f32.mrb[0].mxu0
    %283 = vmatprep.mubr.f32.mxu0 %v85
    %284 = vmatmul.mubr.f32.gmra.mrb[0].mxu0 %v84
    %v285 = vpop.f32.mrb[0].mxu0
    %v286 = vadd.f32 0.0, %v285
    %v287 = vpop.f32.mrb[0].mxu0
    %288 = vmatprep.mubr.f32.mxu0 %v87
    %289 = vmatmul.mubr.f32.gmra.mrb[0].mxu0 %v86
    %v290 = vpop.f32.mrb[0].mxu0
    %v291 = vadd.f32 0.0, %v290
    %v292 = vpop.f32.mrb[0].mxu0
    %293 = vmatprep.mubr.f32.mxu0 %v89
    %294 = vmatmul.mubr.f32.gmra.mrb[0].mxu0 %v88
    %v295 = vpop.f32.mrb[0].mxu0
    %v296 = vadd.f32 0.0, %v295
    %v297 = vpop.f32.mrb[0].mxu0
    %298 = vmatprep.mubr.f32.mxu0 %v91
    %299 = vmatmul.mubr.f32.gmra.mrb[0].mxu0 %v90
    %v300 = vpop.f32.mrb[0].mxu0
    %v301 = vadd.f32 0.0, %v300
    %v302 = vpop.f32.mrb[0].mxu0
    %303 = vmatprep.mubr.f32.mxu0 %v93
    %304 = vmatmul.mubr.f32.gmra.mrb[0].mxu0 %v92
    %v305 = vpop.f32.mrb[0].mxu0
    %v306 = vadd.f32 0.0, %v305
    %v307 = vpop.f32.mrb[0].mxu0
    %308 = vmatprep.mubr.f32.mxu0 %v95
    %309 = vmatmul.mubr.f32.gmra.mrb[0].mxu0 %v94
    %v310 = vpop.f32.mrb[0].mxu0
    %v311 = vadd.f32 0.0, %v310
    %v312 = vpop.f32.mrb[0].mxu0
    %313 = vmatprep.mubr.f32.mxu0 %v97
    %314 = vmatmul.mubr.f32.gmra.mrb[0].mxu0 %v96
    %v315 = vpop.f32.mrb[0].mxu0
    %v316 = vadd.f32 0.0, %v315
    %v317 = vpop.f32.mrb[0].mxu0
    %318 = vmatprep.mubr.f32.mxu0 %v99
    %319 = vmatmul.mubr.f32.gmra.mrb[0].mxu0 %v98
    %v320 = vpop.f32.mrb[0].mxu0
    %v321 = vadd.f32 0.0, %v320
    %v322 = vpop.f32.mrb[0].mxu0
    %323 = vmatprep.mubr.f32.mxu0 %v101
    %324 = vmatmul.mubr.f32.gmra.mrb[0].mxu0 %v100
    %v325 = vpop.f32.mrb[0].mxu0
    %v326 = vadd.f32 0.0, %v325
    %v327 = vpop.f32.mrb[0].mxu0
    %328 = vmatprep.mubr.f32.mxu0 %v103
    %329 = vmatmul.mubr.f32.gmra.mrb[0].mxu0 %v102
    %v330 = vpop.f32.mrb[0].mxu0
    %v331 = vadd.f32 0.0, %v330
    %v332 = vpop.f32.mrb[0].mxu0
    %333 = vmatprep.mubr.f32.mxu0 %v105
    %334 = vmatmul.mubr.f32.gmra.mrb[0].mxu0 %v104
    %v335 = vpop.f32.mrb[0].mxu0
    %v336 = vadd.f32 0.0, %v335
    %v337 = vpop.f32.mrb[0].mxu0
    %338 = vmatprep.mubr.f32.mxu0 %v107
    %339 = vmatmul.mubr.f32.gmra.mrb[0].mxu0 %v106
    %v340 = vpop.f32.mrb[0].mxu0
    %v341 = vadd.f32 0.0, %v340
    %v342 = vpop.f32.mrb[0].mxu0
    %343 = vmatprep.mubr.f32.mxu0 %v109
    %344 = vmatmul.mubr.f32.gmra.mrb[0].mxu0 %v108
    %v345 = vpop.f32.mrb[0].mxu0
    %v346 = vadd.f32 0.0, %v345
    %v347 = vpop.f32.mrb[0].mxu0
    %348 = vmatprep.mubr.f32.mxu0 %v111
    %349 = vmatmul.mubr.f32.gmra.mrb[0].mxu0 %v110
    %v350 = vpop.f32.mrb[0].mxu0
    %v351 = vadd.f32 0.0, %v350
    %v352 = vpop.f32.mrb[0].mxu0
    %353 = vmatprep.mubr.f32.mxu0 %v113
    %354 = vmatmul.mubr.f32.gmra.mrb[0].mxu0 %v112
    %v355 = vpop.f32.mrb[0].mxu0
    %v356 = vadd.f32 0.0, %v355
    %v357 = vpop.f32.mrb[0].mxu0
    %358 = vmatprep.mubr.f32.mxu0 %v115
    %359 = vmatmul.mubr.f32.gmra.mrb[0].mxu0 %v114
    %v360 = vpop.f32.mrb[0].mxu0
    %v361 = vadd.f32 0.0, %v360
    %v362 = vpop.f32.mrb[0].mxu0
    %363 = vmatprep.mubr.f32.mxu0 %v117
    %364 = vmatmul.mubr.f32.gmra.mrb[0].mxu0 %v116
    %v365 = vpop.f32.mrb[0].mxu0
    %v366 = vadd.f32 0.0, %v365
    %v367 = vpop.f32.mrb[0].mxu0
    %368 = vmatprep.mubr.f32.mxu0 %v119
    %369 = vmatmul.mubr.f32.gmra.mrb[0].mxu0 %v118
    %v370 = vpop.f32.mrb[0].mxu0
    %v371 = vadd.f32 0.0, %v370
    %v372 = vpop.f32.mrb[0].mxu0
    %373 = vmatprep.mubr.f32.mxu0 %v121
    %374 = vmatmul.mubr.f32.gmra.mrb[0].mxu0 %v120
    %v375 = vpop.f32.mrb[0].mxu0
    %v376 = vadd.f32 0.0, %v375
    %v377 = vpop.f32.mrb[0].mxu0
    %378 = vdwg.mxu0
    %v379 = vld [vmem:[#allocation6] sm:$0xff]
    %v380 = vld [vmem:[#allocation6 + $0x8] sm:$0xff]
    %v381 = vld [vmem:[#allocation6 + $0x10] sm:$0xff]
    %v382 = vld [vmem:[#allocation6 + $0x18] sm:$0xff]
    %v383 = vld [vmem:[#allocation6 + $0x20] sm:$0xff]
    %v384 = vld [vmem:[#allocation6 + $0x28] sm:$0xff]
    %v385 = vld [vmem:[#allocation6 + $0x30] sm:$0xff]
    %v386 = vld [vmem:[#allocation6 + $0x38] sm:$0xff]
    %v387 = vld [vmem:[#allocation6 + $0x40] sm:$0xff]
    %v388 = vld [vmem:[#allocation6 + $0x48] sm:$0xff]
    %v389 = vld [vmem:[#allocation6 + $0x50] sm:$0xff]
    %v390 = vld [vmem:[#allocation6 + $0x58] sm:$0xff]
    %v391 = vld [vmem:[#allocation6 + $0x60] sm:$0xff]
    %v392 = vld [vmem:[#allocation6 + $0x68] sm:$0xff]
    %v393 = vld [vmem:[#allocation6 + $0x70] sm:$0xff]
    %v394 = vld [vmem:[#allocation6 + $0x78] sm:$0xff]
    %v395 = vld [vmem:[%s3] sm:$0x1]
    %v397 = vlaneseq
    %v398 = vshrl.u32 %v397, 7
    %v399 = vsub.s32 0, %v398
    %v400 = vrot.slane %v395, %v399
    %402 = vmatprep.subr.mxu0 0.0
    %403 = vmatpush1.msra.mxu0 %v379
    %404 = vmatprep.subr.mxu0 0.0
    %405 = vmatpush1.msra.mxu0 %v380
    %406 = vmatprep.subr.mxu0 0.0
    %407 = vmatpush1.msra.mxu0 %v381
    %408 = vmatprep.subr.mxu0 0.0
    %409 = vmatpush1.msra.mxu0 %v382
    %410 = vmatprep.subr.mxu0 0.0
    %411 = vmatpush1.msra.mxu0 %v383
    %412 = vmatprep.subr.mxu0 0.0
    %413 = vmatpush1.msra.mxu0 %v384
    %414 = vmatprep.subr.mxu0 0.0
    %415 = vmatpush1.msra.mxu0 %v385
    %416 = vmatprep.subr.mxu0 0.0
    %417 = vmatpush1.msra.mxu0 %v386
    %418 = vmatprep.subr.mxu0 0.0
    %419 = vmatpush1.msra.mxu0 %v387
    %420 = vmatprep.subr.mxu0 0.0
    %421 = vmatpush1.msra.mxu0 %v388
    %422 = vmatprep.subr.mxu0 0.0
    %423 = vmatpush1.msra.mxu0 %v389
    %424 = vmatprep.subr.mxu0 0.0
    %425 = vmatpush1.msra.mxu0 %v390
    %426 = vmatprep.subr.mxu0 0.0
    %427 = vmatpush1.msra.mxu0 %v391
    %428 = vmatprep.subr.mxu0 0.0
    %429 = vmatpush1.msra.mxu0 %v392
    %430 = vmatprep.subr.mxu0 0.0
    %431 = vmatpush1.msra.mxu0 %v393
    %432 = vmatprep.subr.mxu0 0.0
    %433 = vmatpush1.msra.mxu0 %v394
    %434 = vmatprep.subr.mxu0 0.0
    %435 = vmatpush1.msra.mxu0 0.0
    %436 = vmatprep.subr.mxu0 0.0
    %437 = vmatpush1.msra.mxu0 0.0
    %438 = vmatprep.subr.mxu0 0.0
    %439 = vmatpush1.msra.mxu0 0.0
    %440 = vmatprep.subr.mxu0 0.0
    %441 = vmatpush1.msra.mxu0 0.0
    %442 = vmatprep.subr.mxu0 0.0
    %443 = vmatpush1.msra.mxu0 0.0
    %444 = vmatprep.subr.mxu0 0.0
    %445 = vmatpush1.msra.mxu0 0.0
    %446 = vmatprep.subr.mxu0 0.0
    %447 = vmatpush1.msra.mxu0 0.0
    %448 = vmatprep.subr.mxu0 0.0
    %449 = vmatpush1.msra.mxu0 0.0
    %450 = vmatprep.subr.mxu0 0.0
    %451 = vmatpush1.msra.mxu0 0.0
    %452 = vmatprep.subr.mxu0 0.0
    %453 = vmatpush1.msra.mxu0 0.0
    %454 = vmatprep.subr.mxu0 0.0
    %455 = vmatpush1.msra.mxu0 0.0
    %456 = vmatprep.subr.mxu0 0.0
    %457 = vmatpush1.msra.mxu0 0.0
    %458 = vmatprep.subr.mxu0 0.0
    %459 = vmatpush1.msra.mxu0 0.0
    %460 = vmatprep.subr.mxu0 0.0
    %461 = vmatpush1.msra.mxu0 0.0
    %462 = vmatprep.subr.mxu0 0.0
    %463 = vmatpush1.msra.mxu0 0.0
    %464 = vmatprep.subr.mxu0 0.0
    %465 = vmatpush1.msra.mxu0 0.0
    %466 = vmatprep.mubr.f32.mxu0 0.0
    %467 = vmatmul.mubr.f32.gmra.mrb[0].mxu0 %v221
    %v468 = vpop.f32.mrb[0].mxu0
    %v469 = vadd.f32 %v400, %v468
    %v470 = vpop.f32.mrb[0].mxu0
    %471 = vmatprep.mubr.f32.mxu0 0.0
    %472 = vmatmul.mubr.f32.gmra.mrb[0].mxu0 %v226
    %v473 = vpop.f32.mrb[0].mxu0
    %v474 = vadd.f32 %v400, %v473
    %v475 = vpop.f32.mrb[0].mxu0
    %476 = vmatprep.mubr.f32.mxu0 0.0
    %477 = vmatmul.mubr.f32.gmra.mrb[0].mxu0 %v231
    %v478 = vpop.f32.mrb[0].mxu0
    %v479 = vadd.f32 %v400, %v478
    %v480 = vpop.f32.mrb[0].mxu0
    %481 = vmatprep.mubr.f32.mxu0 0.0
    %482 = vmatmul.mubr.f32.gmra.mrb[0].mxu0 %v236
    %v483 = vpop.f32.mrb[0].mxu0
    %v484 = vadd.f32 %v400, %v483
    %v485 = vpop.f32.mrb[0].mxu0
    %486 = vmatprep.mubr.f32.mxu0 0.0
    %487 = vmatmul.mubr.f32.gmra.mrb[0].mxu0 %v241
    %v488 = vpop.f32.mrb[0].mxu0
    %v489 = vadd.f32 %v400, %v488
    %v490 = vpop.f32.mrb[0].mxu0
    %491 = vmatprep.mubr.f32.mxu0 0.0
    %492 = vmatmul.mubr.f32.gmra.mrb[0].mxu0 %v246
    %v493 = vpop.f32.mrb[0].mxu0
    %v494 = vadd.f32 %v400, %v493
    %v495 = vpop.f32.mrb[0].mxu0
    %496 = vmatprep.mubr.f32.mxu0 0.0
    %497 = vmatmul.mubr.f32.gmra.mrb[0].mxu0 %v251
    %v498 = vpop.f32.mrb[0].mxu0
    %v499 = vadd.f32 %v400, %v498
    %v500 = vpop.f32.mrb[0].mxu0
    %501 = vmatprep.mubr.f32.mxu0 0.0
    %502 = vmatmul.mubr.f32.gmra.mrb[0].mxu0 %v256
    %v503 = vpop.f32.mrb[0].mxu0
    %v504 = vadd.f32 %v400, %v503
    %v505 = vpop.f32.mrb[0].mxu0
    %506 = vmatprep.mubr.f32.mxu0 0.0
    %507 = vmatmul.mubr.f32.gmra.mrb[0].mxu0 %v261
    %v508 = vpop.f32.mrb[0].mxu0
    %v509 = vadd.f32 %v400, %v508
    %v510 = vpop.f32.mrb[0].mxu0
    %511 = vmatprep.mubr.f32.mxu0 0.0
    %512 = vmatmul.mubr.f32.gmra.mrb[0].mxu0 %v266
    %v513 = vpop.f32.mrb[0].mxu0
    %v514 = vadd.f32 %v400, %v513
    %v515 = vpop.f32.mrb[0].mxu0
    %516 = vmatprep.mubr.f32.mxu0 0.0
    %517 = vmatmul.mubr.f32.gmra.mrb[0].mxu0 %v271
    %v518 = vpop.f32.mrb[0].mxu0
    %v519 = vadd.f32 %v400, %v518
    %v520 = vpop.f32.mrb[0].mxu0
    %521 = vmatprep.mubr.f32.mxu0 0.0
    %522 = vmatmul.mubr.f32.gmra.mrb[0].mxu0 %v276
    %v523 = vpop.f32.mrb[0].mxu0
    %v524 = vadd.f32 %v400, %v523
    %v525 = vpop.f32.mrb[0].mxu0
    %526 = vmatprep.mubr.f32.mxu0 0.0
    %527 = vmatmul.mubr.f32.gmra.mrb[0].mxu0 %v281
    %v528 = vpop.f32.mrb[0].mxu0
    %v529 = vadd.f32 %v400, %v528
    %v530 = vpop.f32.mrb[0].mxu0
    %531 = vmatprep.mubr.f32.mxu0 0.0
    %532 = vmatmul.mubr.f32.gmra.mrb[0].mxu0 %v286
    %v533 = vpop.f32.mrb[0].mxu0
    %v534 = vadd.f32 %v400, %v533
    %v535 = vpop.f32.mrb[0].mxu0
    %536 = vmatprep.mubr.f32.mxu0 0.0
    %537 = vmatmul.mubr.f32.gmra.mrb[0].mxu0 %v291
    %v538 = vpop.f32.mrb[0].mxu0
    %v539 = vadd.f32 %v400, %v538
    %v540 = vpop.f32.mrb[0].mxu0
    %541 = vmatprep.mubr.f32.mxu0 0.0
    %542 = vmatmul.mubr.f32.gmra.mrb[0].mxu0 %v296
    %v543 = vpop.f32.mrb[0].mxu0
    %v544 = vadd.f32 %v400, %v543
    %v545 = vpop.f32.mrb[0].mxu0
    %546 = vmatprep.mubr.f32.mxu0 0.0
    %547 = vmatmul.mubr.f32.gmra.mrb[0].mxu0 %v301
    %v548 = vpop.f32.mrb[0].mxu0
    %v549 = vadd.f32 %v400, %v548
    %v550 = vpop.f32.mrb[0].mxu0
    %551 = vmatprep.mubr.f32.mxu0 0.0
    %552 = vmatmul.mubr.f32.gmra.mrb[0].mxu0 %v306
    %v553 = vpop.f32.mrb[0].mxu0
    %v554 = vadd.f32 %v400, %v553
    %v555 = vpop.f32.mrb[0].mxu0
    %556 = vmatprep.mubr.f32.mxu0 0.0
    %557 = vmatmul.mubr.f32.gmra.mrb[0].mxu0 %v311
    %v558 = vpop.f32.mrb[0].mxu0
    %v559 = vadd.f32 %v400, %v558
    %v560 = vpop.f32.mrb[0].mxu0
    %561 = vmatprep.mubr.f32.mxu0 0.0
    %562 = vmatmul.mubr.f32.gmra.mrb[0].mxu0 %v316
    %v563 = vpop.f32.mrb[0].mxu0
    %v564 = vadd.f32 %v400, %v563
    %v565 = vpop.f32.mrb[0].mxu0
    %566 = vmatprep.mubr.f32.mxu0 0.0
    %567 = vmatmul.mubr.f32.gmra.mrb[0].mxu0 %v321
    %v568 = vpop.f32.mrb[0].mxu0
    %v569 = vadd.f32 %v400, %v568
    %v570 = vpop.f32.mrb[0].mxu0
    %571 = vmatprep.mubr.f32.mxu0 0.0
    %572 = vmatmul.mubr.f32.gmra.mrb[0].mxu0 %v326
    %v573 = vpop.f32.mrb[0].mxu0
    %v574 = vadd.f32 %v400, %v573
    %v575 = vpop.f32.mrb[0].mxu0
    %576 = vmatprep.mubr.f32.mxu0 0.0
    %577 = vmatmul.mubr.f32.gmra.mrb[0].mxu0 %v331
    %v578 = vpop.f32.mrb[0].mxu0
    %v579 = vadd.f32 %v400, %v578
    %v580 = vpop.f32.mrb[0].mxu0
    %581 = vmatprep.mubr.f32.mxu0 0.0
    %582 = vmatmul.mubr.f32.gmra.mrb[0].mxu0 %v336
    %v583 = vpop.f32.mrb[0].mxu0
    %v584 = vadd.f32 %v400, %v583
    %v585 = vpop.f32.mrb[0].mxu0
    %586 = vmatprep.mubr.f32.mxu0 0.0
    %587 = vmatmul.mubr.f32.gmra.mrb[0].mxu0 %v341
    %v588 = vpop.f32.mrb[0].mxu0
    %v589 = vadd.f32 %v400, %v588
    %v590 = vpop.f32.mrb[0].mxu0
    %591 = vmatprep.mubr.f32.mxu0 0.0
    %592 = vmatmul.mubr.f32.gmra.mrb[0].mxu0 %v346
    %v593 = vpop.f32.mrb[0].mxu0
    %v594 = vadd.f32 %v400, %v593
    %v595 = vpop.f32.mrb[0].mxu0
    %596 = vmatprep.mubr.f32.mxu0 0.0
    %597 = vmatmul.mubr.f32.gmra.mrb[0].mxu0 %v351
    %v598 = vpop.f32.mrb[0].mxu0
    %v599 = vadd.f32 %v400, %v598
    %v600 = vpop.f32.mrb[0].mxu0
    %601 = vmatprep.mubr.f32.mxu0 0.0
    %602 = vmatmul.mubr.f32.gmra.mrb[0].mxu0 %v356
    %v603 = vpop.f32.mrb[0].mxu0
    %v604 = vadd.f32 %v400, %v603
    %v605 = vpop.f32.mrb[0].mxu0
    %606 = vmatprep.mubr.f32.mxu0 0.0
    %607 = vmatmul.mubr.f32.gmra.mrb[0].mxu0 %v361
    %v608 = vpop.f32.mrb[0].mxu0
    %v609 = vadd.f32 %v400, %v608
    %v610 = vpop.f32.mrb[0].mxu0
    %611 = vmatprep.mubr.f32.mxu0 0.0
    %612 = vmatmul.mubr.f32.gmra.mrb[0].mxu0 %v366
    %v613 = vpop.f32.mrb[0].mxu0
    %v614 = vadd.f32 %v400, %v613
    %v615 = vpop.f32.mrb[0].mxu0
    %616 = vmatprep.mubr.f32.mxu0 0.0
    %617 = vmatmul.mubr.f32.gmra.mrb[0].mxu0 %v371
    %v618 = vpop.f32.mrb[0].mxu0
    %v619 = vadd.f32 %v400, %v618
    %v620 = vpop.f32.mrb[0].mxu0
    %621 = vmatprep.mubr.f32.mxu0 0.0
    %622 = vmatmul.mubr.f32.gmra.mrb[0].mxu0 %v376
    %v623 = vpop.f32.mrb[0].mxu0
    %v624 = vadd.f32 %v400, %v623
    %v625 = vpop.f32.mrb[0].mxu0
    %626 = vdwg.mxu0
    %v627 = vmax.f32 %v469, 0.0
    %v628 = vmax.f32 %v474, 0.0
    %v629 = vmax.f32 %v479, 0.0
    %v630 = vmax.f32 %v484, 0.0
    %v631 = vmax.f32 %v489, 0.0
    %v632 = vmax.f32 %v494, 0.0
    %v633 = vmax.f32 %v499, 0.0
    %v634 = vmax.f32 %v504, 0.0
    %v635 = vmax.f32 %v509, 0.0
    %v636 = vmax.f32 %v514, 0.0
    %v637 = vmax.f32 %v519, 0.0
    %v638 = vmax.f32 %v524, 0.0
    %v639 = vmax.f32 %v529, 0.0
    %v640 = vmax.f32 %v534, 0.0
    %v641 = vmax.f32 %v539, 0.0
    %v642 = vmax.f32 %v544, 0.0
    %v643 = vmax.f32 %v549, 0.0
    %v644 = vmax.f32 %v554, 0.0
    %v645 = vmax.f32 %v559, 0.0
    %v646 = vmax.f32 %v564, 0.0
    %v647 = vmax.f32 %v569, 0.0
    %v648 = vmax.f32 %v574, 0.0
    %v649 = vmax.f32 %v579, 0.0
    %v650 = vmax.f32 %v584, 0.0
    %v651 = vmax.f32 %v589, 0.0
    %v652 = vmax.f32 %v594, 0.0
    %v653 = vmax.f32 %v599, 0.0
    %v654 = vmax.f32 %v604, 0.0
    %v655 = vmax.f32 %v609, 0.0
    %v656 = vmax.f32 %v614, 0.0
    %v657 = vmax.f32 %v619, 0.0
    %v658 = vmax.f32 %v624, 0.0
    %v659 = vadd.f32 %v627, %v122
    %v660 = vadd.f32 %v628, %v123
    %v661 = vadd.f32 %v629, %v124
    %v662 = vadd.f32 %v630, %v125
    %v663 = vadd.f32 %v631, %v126
    %v664 = vadd.f32 %v632, %v127
    %v665 = vadd.f32 %v633, %v128
    %v666 = vadd.f32 %v634, %v129
    %v667 = vadd.f32 %v635, %v130
    %v668 = vadd.f32 %v636, %v131
    %v669 = vadd.f32 %v637, %v132
    %v670 = vadd.f32 %v638, %v133
    %v671 = vadd.f32 %v639, %v134
    %v672 = vadd.f32 %v640, %v135
    %v673 = vadd.f32 %v641, %v136
    %v674 = vadd.f32 %v642, %v137
    %v675 = vadd.f32 %v643, %v138
    %v676 = vadd.f32 %v644, %v139
    %v677 = vadd.f32 %v645, %v140
    %v678 = vadd.f32 %v646, %v141
    %v679 = vadd.f32 %v647, %v142
    %v680 = vadd.f32 %v648, %v143
    %v681 = vadd.f32 %v649, %v144
    %v682 = vadd.f32 %v650, %v145
    %v683 = vadd.f32 %v651, %v146
    %v684 = vadd.f32 %v652, %v147
    %v685 = vadd.f32 %v653, %v148
    %v686 = vadd.f32 %v654, %v149
    %v687 = vadd.f32 %v655, %v150
    %v688 = vadd.f32 %v656, %v151
    %v689 = vadd.f32 %v657, %v152
    %v690 = vadd.f32 %v658, %v153
    %691 = vmatprep.subr.mxu0 0.0
    %692 = vmatpush1.msra.mxu0 %v659
    %693 = vmatprep.subr.mxu0 0.0
    %694 = vmatpush1.msra.mxu0 %v660
    %695 = vmatprep.subr.mxu0 0.0
    %696 = vmatpush1.msra.mxu0 %v661
    %697 = vmatprep.subr.mxu0 0.0
    %698 = vmatpush1.msra.mxu0 %v662
    %699 = vmatprep.subr.mxu0 0.0
    %700 = vmatpush1.msra.mxu0 %v663
    %701 = vmatprep.subr.mxu0 0.0
    %702 = vmatpush1.msra.mxu0 %v664
    %703 = vmatprep.subr.mxu0 0.0
    %704 = vmatpush1.msra.mxu0 %v665
    %705 = vmatprep.subr.mxu0 0.0
    %706 = vmatpush1.msra.mxu0 %v666
    %707 = vmatprep.subr.mxu0 0.0
    %708 = vmatpush1.msra.mxu0 %v667
    %709 = vmatprep.subr.mxu0 0.0
    %710 = vmatpush1.msra.mxu0 %v668
    %711 = vmatprep.subr.mxu0 0.0
    %712 = vmatpush1.msra.mxu0 %v669
    %713 = vmatprep.subr.mxu0 0.0
    %714 = vmatpush1.msra.mxu0 %v670
    %715 = vmatprep.subr.mxu0 0.0
    %716 = vmatpush1.msra.mxu0 %v671
    %717 = vmatprep.subr.mxu0 0.0
    %718 = vmatpush1.msra.mxu0 %v672
    %719 = vmatprep.subr.mxu0 0.0
    %720 = vmatpush1.msra.mxu0 %v673
    %721 = vmatprep.subr.mxu0 0.0
    %722 = vmatpush1.msra.mxu0 %v674
    %723 = vmatprep.subr.mxu0 0.0
    %724 = vmatpush1.msra.mxu0 %v675
    %725 = vmatprep.subr.mxu0 0.0
    %726 = vmatpush1.msra.mxu0 %v676
    %727 = vmatprep.subr.mxu0 0.0
    %728 = vmatpush1.msra.mxu0 %v677
    %729 = vmatprep.subr.mxu0 0.0
    %730 = vmatpush1.msra.mxu0 %v678
    %731 = vmatprep.subr.mxu0 0.0
    %732 = vmatpush1.msra.mxu0 %v679
    %733 = vmatprep.subr.mxu0 0.0
    %734 = vmatpush1.msra.mxu0 %v680
    %735 = vmatprep.subr.mxu0 0.0
    %736 = vmatpush1.msra.mxu0 %v681
    %737 = vmatprep.subr.mxu0 0.0
    %738 = vmatpush1.msra.mxu0 %v682
    %739 = vmatprep.subr.mxu0 0.0
    %740 = vmatpush1.msra.mxu0 %v683
    %741 = vmatprep.subr.mxu0 0.0
    %742 = vmatpush1.msra.mxu0 %v684
    %743 = vmatprep.subr.mxu0 0.0
    %744 = vmatpush1.msra.mxu0 %v685
    %745 = vmatprep.subr.mxu0 0.0
    %746 = vmatpush1.msra.mxu0 %v686
    %747 = vmatprep.subr.mxu0 0.0
    %748 = vmatpush1.msra.mxu0 %v687
    %749 = vmatprep.subr.mxu0 0.0
    %750 = vmatpush1.msra.mxu0 %v688
    %751 = vmatprep.subr.mxu0 0.0
    %752 = vmatpush1.msra.mxu0 %v689
    %753 = vmatprep.subr.mxu0 0.0
    %754 = vmatpush1.msra.mxu0 %v690
    %755 = vmatprep.mubr.f32.mxu0 %v59
    %756 = vmatmul.mubr.f32.gmra.mrb[0].mxu0 %v58
    %v757 = vpop.f32.mrb[0].mxu0
    %v758 = vadd.f32 0.0, %v757
    %v759 = vpop.f32.mrb[0].mxu0
    %760 = vmatprep.mubr.f32.mxu0 %v61
    %761 = vmatmul.mubr.f32.gmra.mrb[0].mxu0 %v60
    %v762 = vpop.f32.mrb[0].mxu0
    %v763 = vadd.f32 0.0, %v762
    %v764 = vpop.f32.mrb[0].mxu0
    %765 = vmatprep.mubr.f32.mxu0 %v63
    %766 = vmatmul.mubr.f32.gmra.mrb[0].mxu0 %v62
    %v767 = vpop.f32.mrb[0].mxu0
    %v768 = vadd.f32 0.0, %v767
    %v769 = vpop.f32.mrb[0].mxu0
    %770 = vmatprep.mubr.f32.mxu0 %v65
    %771 = vmatmul.mubr.f32.gmra.mrb[0].mxu0 %v64
    %v772 = vpop.f32.mrb[0].mxu0
    %v773 = vadd.f32 0.0, %v772
    %v774 = vpop.f32.mrb[0].mxu0
    %775 = vmatprep.mubr.f32.mxu0 %v67
    %776 = vmatmul.mubr.f32.gmra.mrb[0].mxu0 %v66
    %v777 = vpop.f32.mrb[0].mxu0
    %v778 = vadd.f32 0.0, %v777
    %v779 = vpop.f32.mrb[0].mxu0
    %780 = vmatprep.mubr.f32.mxu0 %v69
    %781 = vmatmul.mubr.f32.gmra.mrb[0].mxu0 %v68
    %v782 = vpop.f32.mrb[0].mxu0
    %v783 = vadd.f32 0.0, %v782
    %v784 = vpop.f32.mrb[0].mxu0
    %785 = vmatprep.mubr.f32.mxu0 %v71
    %786 = vmatmul.mubr.f32.gmra.mrb[0].mxu0 %v70
    %v787 = vpop.f32.mrb[0].mxu0
    %v788 = vadd.f32 0.0, %v787
    %v789 = vpop.f32.mrb[0].mxu0
    %790 = vmatprep.mubr.f32.mxu0 %v73
    %791 = vmatmul.mubr.f32.gmra.mrb[0].mxu0 %v72
    %v792 = vpop.f32.mrb[0].mxu0
    %v793 = vadd.f32 0.0, %v792
    %v794 = vpop.f32.mrb[0].mxu0
    %795 = vmatprep.mubr.f32.mxu0 %v75
    %796 = vmatmul.mubr.f32.gmra.mrb[0].mxu0 %v74
    %v797 = vpop.f32.mrb[0].mxu0
    %v798 = vadd.f32 0.0, %v797
    %v799 = vpop.f32.mrb[0].mxu0
    %800 = vmatprep.mubr.f32.mxu0 %v77
    %801 = vmatmul.mubr.f32.gmra.mrb[0].mxu0 %v76
    %v802 = vpop.f32.mrb[0].mxu0
    %v803 = vadd.f32 0.0, %v802
    %v804 = vpop.f32.mrb[0].mxu0
    %805 = vmatprep.mubr.f32.mxu0 %v79
    %806 = vmatmul.mubr.f32.gmra.mrb[0].mxu0 %v78
    %v807 = vpop.f32.mrb[0].mxu0
    %v808 = vadd.f32 0.0, %v807
    %v809 = vpop.f32.mrb[0].mxu0
    %810 = vmatprep.mubr.f32.mxu0 %v81
    %811 = vmatmul.mubr.f32.gmra.mrb[0].mxu0 %v80
    %v812 = vpop.f32.mrb[0].mxu0
    %v813 = vadd.f32 0.0, %v812
    %v814 = vpop.f32.mrb[0].mxu0
    %815 = vmatprep.mubr.f32.mxu0 %v83
    %816 = vmatmul.mubr.f32.gmra.mrb[0].mxu0 %v82
    %v817 = vpop.f32.mrb[0].mxu0
    %v818 = vadd.f32 0.0, %v817
    %v819 = vpop.f32.mrb[0].mxu0
    %820 = vmatprep.mubr.f32.mxu0 %v85
    %821 = vmatmul.mubr.f32.gmra.mrb[0].mxu0 %v84
    %v822 = vpop.f32.mrb[0].mxu0
    %v823 = vadd.f32 0.0, %v822
    %v824 = vpop.f32.mrb[0].mxu0
    %825 = vmatprep.mubr.f32.mxu0 %v87
    %826 = vmatmul.mubr.f32.gmra.mrb[0].mxu0 %v86
    %v827 = vpop.f32.mrb[0].mxu0
    %v828 = vadd.f32 0.0, %v827
    %v829 = vpop.f32.mrb[0].mxu0
    %830 = vmatprep.mubr.f32.mxu0 %v89
    %831 = vmatmul.mubr.f32.gmra.mrb[0].mxu0 %v88
    %v832 = vpop.f32.mrb[0].mxu0
    %v833 = vadd.f32 0.0, %v832
    %v834 = vpop.f32.mrb[0].mxu0
    %835 = vmatprep.mubr.f32.mxu0 %v91
    %836 = vmatmul.mubr.f32.gmra.mrb[0].mxu0 %v90
    %v837 = vpop.f32.mrb[0].mxu0
    %v838 = vadd.f32 0.0, %v837
    %v839 = vpop.f32.mrb[0].mxu0
    %840 = vmatprep.mubr.f32.mxu0 %v93
    %841 = vmatmul.mubr.f32.gmra.mrb[0].mxu0 %v92
    %v842 = vpop.f32.mrb[0].mxu0
    %v843 = vadd.f32 0.0, %v842
    %v844 = vpop.f32.mrb[0].mxu0
    %845 = vmatprep.mubr.f32.mxu0 %v95
    %846 = vmatmul.mubr.f32.gmra.mrb[0].mxu0 %v94
    %v847 = vpop.f32.mrb[0].mxu0
    %v848 = vadd.f32 0.0, %v847
    %v849 = vpop.f32.mrb[0].mxu0
    %850 = vmatprep.mubr.f32.mxu0 %v97
    %851 = vmatmul.mubr.f32.gmra.mrb[0].mxu0 %v96
    %v852 = vpop.f32.mrb[0].mxu0
    %v853 = vadd.f32 0.0, %v852
    %v854 = vpop.f32.mrb[0].mxu0
    %855 = vmatprep.mubr.f32.mxu0 %v99
    %856 = vmatmul.mubr.f32.gmra.mrb[0].mxu0 %v98
    %v857 = vpop.f32.mrb[0].mxu0
    %v858 = vadd.f32 0.0, %v857
    %v859 = vpop.f32.mrb[0].mxu0
    %860 = vmatprep.mubr.f32.mxu0 %v101
    %861 = vmatmul.mubr.f32.gmra.mrb[0].mxu0 %v100
    %v862 = vpop.f32.mrb[0].mxu0
    %v863 = vadd.f32 0.0, %v862
    %v864 = vpop.f32.mrb[0].mxu0
    %865 = vmatprep.mubr.f32.mxu0 %v103
    %866 = vmatmul.mubr.f32.gmra.mrb[0].mxu0 %v102
    %v867 = vpop.f32.mrb[0].mxu0
    %v868 = vadd.f32 0.0, %v867
    %v869 = vpop.f32.mrb[0].mxu0
    %870 = vmatprep.mubr.f32.mxu0 %v105
    %871 = vmatmul.mubr.f32.gmra.mrb[0].mxu0 %v104
    %v872 = vpop.f32.mrb[0].mxu0
    %v873 = vadd.f32 0.0, %v872
    %v874 = vpop.f32.mrb[0].mxu0
    %875 = vmatprep.mubr.f32.mxu0 %v107
    %876 = vmatmul.mubr.f32.gmra.mrb[0].mxu0 %v106
    %v877 = vpop.f32.mrb[0].mxu0
    %v878 = vadd.f32 0.0, %v877
    %v879 = vpop.f32.mrb[0].mxu0
    %880 = vmatprep.mubr.f32.mxu0 %v109
    %881 = vmatmul.mubr.f32.gmra.mrb[0].mxu0 %v108
    %v882 = vpop.f32.mrb[0].mxu0
    %v883 = vadd.f32 0.0, %v882
    %v884 = vpop.f32.mrb[0].mxu0
    %885 = vmatprep.mubr.f32.mxu0 %v111
    %886 = vmatmul.mubr.f32.gmra.mrb[0].mxu0 %v110
    %v887 = vpop.f32.mrb[0].mxu0
    %v888 = vadd.f32 0.0, %v887
    %v889 = vpop.f32.mrb[0].mxu0
    %890 = vmatprep.mubr.f32.mxu0 %v113
    %891 = vmatmul.mubr.f32.gmra.mrb[0].mxu0 %v112
    %v892 = vpop.f32.mrb[0].mxu0
    %v893 = vadd.f32 0.0, %v892
    %v894 = vpop.f32.mrb[0].mxu0
    %895 = vmatprep.mubr.f32.mxu0 %v115
    %896 = vmatmul.mubr.f32.gmra.mrb[0].mxu0 %v114
    %v897 = vpop.f32.mrb[0].mxu0
    %v898 = vadd.f32 0.0, %v897
    %v899 = vpop.f32.mrb[0].mxu0
    %900 = vmatprep.mubr.f32.mxu0 %v117
    %901 = vmatmul.mubr.f32.gmra.mrb[0].mxu0 %v116
    %v902 = vpop.f32.mrb[0].mxu0
    %v903 = vadd.f32 0.0, %v902
    %v904 = vpop.f32.mrb[0].mxu0
    %905 = vmatprep.mubr.f32.mxu0 %v119
    %906 = vmatmul.mubr.f32.gmra.mrb[0].mxu0 %v118
    %v907 = vpop.f32.mrb[0].mxu0
    %v908 = vadd.f32 0.0, %v907
    %v909 = vpop.f32.mrb[0].mxu0
    %910 = vmatprep.mubr.f32.mxu0 %v121
    %911 = vmatmul.mubr.f32.gmra.mrb[0].mxu0 %v120
    %v912 = vpop.f32.mrb[0].mxu0
    %v913 = vadd.f32 0.0, %v912
    %v914 = vpop.f32.mrb[0].mxu0
    %915 = vdwg.mxu0
    %s916 = scalar_lea.vmem [#allocation6], 128
    %v917 = vld [vmem:[%s916] sm:$0xff]
    %v918 = vld [vmem:[%s916 + $0x8] sm:$0xff]
    %v919 = vld [vmem:[%s916 + $0x10] sm:$0xff]
    %v920 = vld [vmem:[%s916 + $0x18] sm:$0xff]
    %v921 = vld [vmem:[%s916 + $0x20] sm:$0xff]
    %v922 = vld [vmem:[%s916 + $0x28] sm:$0xff]
    %v923 = vld [vmem:[%s916 + $0x30] sm:$0xff]
    %v924 = vld [vmem:[%s916 + $0x38] sm:$0xff]
    %v925 = vld [vmem:[%s916 + $0x40] sm:$0xff]
    %v926 = vld [vmem:[%s916 + $0x48] sm:$0xff]
    %v927 = vld [vmem:[%s916 + $0x50] sm:$0xff]
    %v928 = vld [vmem:[%s916 + $0x58] sm:$0xff]
    %v929 = vld [vmem:[%s916 + $0x60] sm:$0xff]
    %v930 = vld [vmem:[%s916 + $0x68] sm:$0xff]
    %v931 = vld [vmem:[%s916 + $0x70] sm:$0xff]
    %v932 = vld [vmem:[%s916 + $0x78] sm:$0xff]
    %s933 = scalar_lea.vmem %s3, 1
    %v934 = vld [vmem:[%s933] sm:$0x1]
    %v936 = vlaneseq
    %v937 = vshrl.u32 %v936, 7
    %v938 = vsub.s32 0, %v937
    %v939 = vrot.slane %v934, %v938
    %941 = vmatprep.subr.mxu0 0.0
    %942 = vmatpush1.msra.mxu0 %v917
    %943 = vmatprep.subr.mxu0 0.0
    %944 = vmatpush1.msra.mxu0 %v918
    %945 = vmatprep.subr.mxu0 0.0
    %946 = vmatpush1.msra.mxu0 %v919
    %947 = vmatprep.subr.mxu0 0.0
    %948 = vmatpush1.msra.mxu0 %v920
    %949 = vmatprep.subr.mxu0 0.0
    %950 = vmatpush1.msra.mxu0 %v921
    %951 = vmatprep.subr.mxu0 0.0
    %952 = vmatpush1.msra.mxu0 %v922
    %953 = vmatprep.subr.mxu0 0.0
    %954 = vmatpush1.msra.mxu0 %v923
    %955 = vmatprep.subr.mxu0 0.0
    %956 = vmatpush1.msra.mxu0 %v924
    %957 = vmatprep.subr.mxu0 0.0
    %958 = vmatpush1.msra.mxu0 %v925
    %959 = vmatprep.subr.mxu0 0.0
    %960 = vmatpush1.msra.mxu0 %v926
    %961 = vmatprep.subr.mxu0 0.0
    %962 = vmatpush1.msra.mxu0 %v927
    %963 = vmatprep.subr.mxu0 0.0
    %964 = vmatpush1.msra.mxu0 %v928
    %965 = vmatprep.subr.mxu0 0.0
    %966 = vmatpush1.msra.mxu0 %v929
    %967 = vmatprep.subr.mxu0 0.0
    %968 = vmatpush1.msra.mxu0 %v930
    %969 = vmatprep.subr.mxu0 0.0
    %970 = vmatpush1.msra.mxu0 %v931
    %971 = vmatprep.subr.mxu0 0.0
    %972 = vmatpush1.msra.mxu0 %v932
    %973 = vmatprep.subr.mxu0 0.0
    %974 = vmatpush1.msra.mxu0 0.0
    %975 = vmatprep.subr.mxu0 0.0
    %976 = vmatpush1.msra.mxu0 0.0
    %977 = vmatprep.subr.mxu0 0.0
    %978 = vmatpush1.msra.mxu0 0.0
    %979 = vmatprep.subr.mxu0 0.0
    %980 = vmatpush1.msra.mxu0 0.0
    %981 = vmatprep.subr.mxu0 0.0
    %982 = vmatpush1.msra.mxu0 0.0
    %983 = vmatprep.subr.mxu0 0.0
    %984 = vmatpush1.msra.mxu0 0.0
    %985 = vmatprep.subr.mxu0 0.0
    %986 = vmatpush1.msra.mxu0 0.0
    %987 = vmatprep.subr.mxu0 0.0
    %988 = vmatpush1.msra.mxu0 0.0
    %989 = vmatprep.subr.mxu0 0.0
    %990 = vmatpush1.msra.mxu0 0.0
    %991 = vmatprep.subr.mxu0 0.0
    %992 = vmatpush1.msra.mxu0 0.0
    %993 = vmatprep.subr.mxu0 0.0
    %994 = vmatpush1.msra.mxu0 0.0
    %995 = vmatprep.subr.mxu0 0.0
    %996 = vmatpush1.msra.mxu0 0.0
    %997 = vmatprep.subr.mxu0 0.0
    %998 = vmatpush1.msra.mxu0 0.0
    %999 = vmatprep.subr.mxu0 0.0
    %1000 = vmatpush1.msra.mxu0 0.0
    %1001 = vmatprep.subr.mxu0 0.0
    %1002 = vmatpush1.msra.mxu0 0.0
    %1003 = vmatprep.subr.mxu0 0.0
    %1004 = vmatpush1.msra.mxu0 0.0
    %1005 = vmatprep.mubr.f32.mxu0 0.0
    %1006 = vmatmul.mubr.f32.gmra.mrb[0].mxu0 %v758
    %v1007 = vpop.f32.mrb[0].mxu0
    %v1008 = vadd.f32 %v939, %v1007
    %v1009 = vpop.f32.mrb[0].mxu0
    %1010 = vmatprep.mubr.f32.mxu0 0.0
    %1011 = vmatmul.mubr.f32.gmra.mrb[0].mxu0 %v763
    %v1012 = vpop.f32.mrb[0].mxu0
    %v1013 = vadd.f32 %v939, %v1012
    %v1014 = vpop.f32.mrb[0].mxu0
    %1015 = vmatprep.mubr.f32.mxu0 0.0
    %1016 = vmatmul.mubr.f32.gmra.mrb[0].mxu0 %v768
    %v1017 = vpop.f32.mrb[0].mxu0
    %v1018 = vadd.f32 %v939, %v1017
    %v1019 = vpop.f32.mrb[0].mxu0
    %1020 = vmatprep.mubr.f32.mxu0 0.0
    %1021 = vmatmul.mubr.f32.gmra.mrb[0].mxu0 %v773
    %v1022 = vpop.f32.mrb[0].mxu0
    %v1023 = vadd.f32 %v939, %v1022
    %v1024 = vpop.f32.mrb[0].mxu0
    %1025 = vmatprep.mubr.f32.mxu0 0.0
    %1026 = vmatmul.mubr.f32.gmra.mrb[0].mxu0 %v778
    %v1027 = vpop.f32.mrb[0].mxu0
    %v1028 = vadd.f32 %v939, %v1027
    %v1029 = vpop.f32.mrb[0].mxu0
    %1030 = vmatprep.mubr.f32.mxu0 0.0
    %1031 = vmatmul.mubr.f32.gmra.mrb[0].mxu0 %v783
    %v1032 = vpop.f32.mrb[0].mxu0
    %v1033 = vadd.f32 %v939, %v1032
    %v1034 = vpop.f32.mrb[0].mxu0
    %1035 = vmatprep.mubr.f32.mxu0 0.0
    %1036 = vmatmul.mubr.f32.gmra.mrb[0].mxu0 %v788
    %v1037 = vpop.f32.mrb[0].mxu0
    %v1038 = vadd.f32 %v939, %v1037
    %v1039 = vpop.f32.mrb[0].mxu0
    %1040 = vmatprep.mubr.f32.mxu0 0.0
    %1041 = vmatmul.mubr.f32.gmra.mrb[0].mxu0 %v793
    %v1042 = vpop.f32.mrb[0].mxu0
    %v1043 = vadd.f32 %v939, %v1042
    %v1044 = vpop.f32.mrb[0].mxu0
    %1045 = vmatprep.mubr.f32.mxu0 0.0
    %1046 = vmatmul.mubr.f32.gmra.mrb[0].mxu0 %v798
    %v1047 = vpop.f32.mrb[0].mxu0
    %v1048 = vadd.f32 %v939, %v1047
    %v1049 = vpop.f32.mrb[0].mxu0
    %1050 = vmatprep.mubr.f32.mxu0 0.0
    %1051 = vmatmul.mubr.f32.gmra.mrb[0].mxu0 %v803
    %v1052 = vpop.f32.mrb[0].mxu0
    %v1053 = vadd.f32 %v939, %v1052
    %v1054 = vpop.f32.mrb[0].mxu0
    %1055 = vmatprep.mubr.f32.mxu0 0.0
    %1056 = vmatmul.mubr.f32.gmra.mrb[0].mxu0 %v808
    %v1057 = vpop.f32.mrb[0].mxu0
    %v1058 = vadd.f32 %v939, %v1057
    %v1059 = vpop.f32.mrb[0].mxu0
    %1060 = vmatprep.mubr.f32.mxu0 0.0
    %1061 = vmatmul.mubr.f32.gmra.mrb[0].mxu0 %v813
    %v1062 = vpop.f32.mrb[0].mxu0
    %v1063 = vadd.f32 %v939, %v1062
    %v1064 = vpop.f32.mrb[0].mxu0
    %1065 = vmatprep.mubr.f32.mxu0 0.0
    %1066 = vmatmul.mubr.f32.gmra.mrb[0].mxu0 %v818
    %v1067 = vpop.f32.mrb[0].mxu0
    %v1068 = vadd.f32 %v939, %v1067
    %v1069 = vpop.f32.mrb[0].mxu0
    %1070 = vmatprep.mubr.f32.mxu0 0.0
    %1071 = vmatmul.mubr.f32.gmra.mrb[0].mxu0 %v823
    %v1072 = vpop.f32.mrb[0].mxu0
    %v1073 = vadd.f32 %v939, %v1072
    %v1074 = vpop.f32.mrb[0].mxu0
    %1075 = vmatprep.mubr.f32.mxu0 0.0
    %1076 = vmatmul.mubr.f32.gmra.mrb[0].mxu0 %v828
    %v1077 = vpop.f32.mrb[0].mxu0
    %v1078 = vadd.f32 %v939, %v1077
    %v1079 = vpop.f32.mrb[0].mxu0
    %1080 = vmatprep.mubr.f32.mxu0 0.0
    %1081 = vmatmul.mubr.f32.gmra.mrb[0].mxu0 %v833
    %v1082 = vpop.f32.mrb[0].mxu0
    %v1083 = vadd.f32 %v939, %v1082
    %v1084 = vpop.f32.mrb[0].mxu0
    %1085 = vmatprep.mubr.f32.mxu0 0.0
    %1086 = vmatmul.mubr.f32.gmra.mrb[0].mxu0 %v838
    %v1087 = vpop.f32.mrb[0].mxu0
    %v1088 = vadd.f32 %v939, %v1087
    %v1089 = vpop.f32.mrb[0].mxu0
    %1090 = vmatprep.mubr.f32.mxu0 0.0
    %1091 = vmatmul.mubr.f32.gmra.mrb[0].mxu0 %v843
    %v1092 = vpop.f32.mrb[0].mxu0
    %v1093 = vadd.f32 %v939, %v1092
    %v1094 = vpop.f32.mrb[0].mxu0
    %1095 = vmatprep.mubr.f32.mxu0 0.0
    %1096 = vmatmul.mubr.f32.gmra.mrb[0].mxu0 %v848
    %v1097 = vpop.f32.mrb[0].mxu0
    %v1098 = vadd.f32 %v939, %v1097
    %v1099 = vpop.f32.mrb[0].mxu0
    %1100 = vmatprep.mubr.f32.mxu0 0.0
    %1101 = vmatmul.mubr.f32.gmra.mrb[0].mxu0 %v853
    %v1102 = vpop.f32.mrb[0].mxu0
    %v1103 = vadd.f32 %v939, %v1102
    %v1104 = vpop.f32.mrb[0].mxu0
    %1105 = vmatprep.mubr.f32.mxu0 0.0
    %1106 = vmatmul.mubr.f32.gmra.mrb[0].mxu0 %v858
    %v1107 = vpop.f32.mrb[0].mxu0
    %v1108 = vadd.f32 %v939, %v1107
    %v1109 = vpop.f32.mrb[0].mxu0
    %1110 = vmatprep.mubr.f32.mxu0 0.0
    %1111 = vmatmul.mubr.f32.gmra.mrb[0].mxu0 %v863
    %v1112 = vpop.f32.mrb[0].mxu0
    %v1113 = vadd.f32 %v939, %v1112
    %v1114 = vpop.f32.mrb[0].mxu0
    %1115 = vmatprep.mubr.f32.mxu0 0.0
    %1116 = vmatmul.mubr.f32.gmra.mrb[0].mxu0 %v868
    %v1117 = vpop.f32.mrb[0].mxu0
    %v1118 = vadd.f32 %v939, %v1117
    %v1119 = vpop.f32.mrb[0].mxu0
    %1120 = vmatprep.mubr.f32.mxu0 0.0
    %1121 = vmatmul.mubr.f32.gmra.mrb[0].mxu0 %v873
    %v1122 = vpop.f32.mrb[0].mxu0
    %v1123 = vadd.f32 %v939, %v1122
    %v1124 = vpop.f32.mrb[0].mxu0
    %1125 = vmatprep.mubr.f32.mxu0 0.0
    %1126 = vmatmul.mubr.f32.gmra.mrb[0].mxu0 %v878
    %v1127 = vpop.f32.mrb[0].mxu0
    %v1128 = vadd.f32 %v939, %v1127
    %v1129 = vpop.f32.mrb[0].mxu0
    %1130 = vmatprep.mubr.f32.mxu0 0.0
    %1131 = vmatmul.mubr.f32.gmra.mrb[0].mxu0 %v883
    %v1132 = vpop.f32.mrb[0].mxu0
    %v1133 = vadd.f32 %v939, %v1132
    %v1134 = vpop.f32.mrb[0].mxu0
    %1135 = vmatprep.mubr.f32.mxu0 0.0
    %1136 = vmatmul.mubr.f32.gmra.mrb[0].mxu0 %v888
    %v1137 = vpop.f32.mrb[0].mxu0
    %v1138 = vadd.f32 %v939, %v1137
    %v1139 = vpop.f32.mrb[0].mxu0
    %1140 = vmatprep.mubr.f32.mxu0 0.0
    %1141 = vmatmul.mubr.f32.gmra.mrb[0].mxu0 %v893
    %v1142 = vpop.f32.mrb[0].mxu0
    %v1143 = vadd.f32 %v939, %v1142
    %v1144 = vpop.f32.mrb[0].mxu0
    %1145 = vmatprep.mubr.f32.mxu0 0.0
    %1146 = vmatmul.mubr.f32.gmra.mrb[0].mxu0 %v898
    %v1147 = vpop.f32.mrb[0].mxu0
    %v1148 = vadd.f32 %v939, %v1147
    %v1149 = vpop.f32.mrb[0].mxu0
    %1150 = vmatprep.mubr.f32.mxu0 0.0
    %1151 = vmatmul.mubr.f32.gmra.mrb[0].mxu0 %v903
    %v1152 = vpop.f32.mrb[0].mxu0
    %v1153 = vadd.f32 %v939, %v1152
    %v1154 = vpop.f32.mrb[0].mxu0
    %1155 = vmatprep.mubr.f32.mxu0 0.0
    %1156 = vmatmul.mubr.f32.gmra.mrb[0].mxu0 %v908
    %v1157 = vpop.f32.mrb[0].mxu0
    %v1158 = vadd.f32 %v939, %v1157
    %v1159 = vpop.f32.mrb[0].mxu0
    %1160 = vmatprep.mubr.f32.mxu0 0.0
    %1161 = vmatmul.mubr.f32.gmra.mrb[0].mxu0 %v913
    %v1162 = vpop.f32.mrb[0].mxu0
    %v1163 = vadd.f32 %v939, %v1162
    %v1164 = vpop.f32.mrb[0].mxu0
    %1165 = vdwg.mxu0
    %v1166 = vmax.f32 %v1008, 0.0
    %v1167 = vmax.f32 %v1013, 0.0
    %v1168 = vmax.f32 %v1018, 0.0
    %v1169 = vmax.f32 %v1023, 0.0
    %v1170 = vmax.f32 %v1028, 0.0
    %v1171 = vmax.f32 %v1033, 0.0
    %v1172 = vmax.f32 %v1038, 0.0
    %v1173 = vmax.f32 %v1043, 0.0
    %v1174 = vmax.f32 %v1048, 0.0
    %v1175 = vmax.f32 %v1053, 0.0
    %v1176 = vmax.f32 %v1058, 0.0
    %v1177 = vmax.f32 %v1063, 0.0
    %v1178 = vmax.f32 %v1068, 0.0
    %v1179 = vmax.f32 %v1073, 0.0
    %v1180 = vmax.f32 %v1078, 0.0
    %v1181 = vmax.f32 %v1083, 0.0
    %v1182 = vmax.f32 %v1088, 0.0
    %v1183 = vmax.f32 %v1093, 0.0
    %v1184 = vmax.f32 %v1098, 0.0
    %v1185 = vmax.f32 %v1103, 0.0
    %v1186 = vmax.f32 %v1108, 0.0
    %v1187 = vmax.f32 %v1113, 0.0
    %v1188 = vmax.f32 %v1118, 0.0
    %v1189 = vmax.f32 %v1123, 0.0
    %v1190 = vmax.f32 %v1128, 0.0
    %v1191 = vmax.f32 %v1133, 0.0
    %v1192 = vmax.f32 %v1138, 0.0
    %v1193 = vmax.f32 %v1143, 0.0
    %v1194 = vmax.f32 %v1148, 0.0
    %v1195 = vmax.f32 %v1153, 0.0
    %v1196 = vmax.f32 %v1158, 0.0
    %v1197 = vmax.f32 %v1163, 0.0
    %v1198 = vadd.f32 %v1166, %v122
    %v1199 = vadd.f32 %v1167, %v123
    %v1200 = vadd.f32 %v1168, %v124
    %v1201 = vadd.f32 %v1169, %v125
    %v1202 = vadd.f32 %v1170, %v126
    %v1203 = vadd.f32 %v1171, %v127
    %v1204 = vadd.f32 %v1172, %v128
    %v1205 = vadd.f32 %v1173, %v129
    %v1206 = vadd.f32 %v1174, %v130
    %v1207 = vadd.f32 %v1175, %v131
    %v1208 = vadd.f32 %v1176, %v132
    %v1209 = vadd.f32 %v1177, %v133
    %v1210 = vadd.f32 %v1178, %v134
    %v1211 = vadd.f32 %v1179, %v135
    %v1212 = vadd.f32 %v1180, %v136
    %v1213 = vadd.f32 %v1181, %v137
    %v1214 = vadd.f32 %v1182, %v138
    %v1215 = vadd.f32 %v1183, %v139
    %v1216 = vadd.f32 %v1184, %v140
    %v1217 = vadd.f32 %v1185, %v141
    %v1218 = vadd.f32 %v1186, %v142
    %v1219 = vadd.f32 %v1187, %v143
    %v1220 = vadd.f32 %v1188, %v144
    %v1221 = vadd.f32 %v1189, %v145
    %v1222 = vadd.f32 %v1190, %v146
    %v1223 = vadd.f32 %v1191, %v147
    %v1224 = vadd.f32 %v1192, %v148
    %v1225 = vadd.f32 %v1193, %v149
    %v1226 = vadd.f32 %v1194, %v150
    %v1227 = vadd.f32 %v1195, %v151
    %v1228 = vadd.f32 %v1196, %v152
    %v1229 = vadd.f32 %v1197, %v153
    %1230 = vmatprep.subr.mxu0 0.0
    %1231 = vmatpush1.msra.mxu0 %v1198
    %1232 = vmatprep.subr.mxu0 0.0
    %1233 = vmatpush1.msra.mxu0 %v1199
    %1234 = vmatprep.subr.mxu0 0.0
    %1235 = vmatpush1.msra.mxu0 %v1200
    %1236 = vmatprep.subr.mxu0 0.0
    %1237 = vmatpush1.msra.mxu0 %v1201
    %1238 = vmatprep.subr.mxu0 0.0
    %1239 = vmatpush1.msra.mxu0 %v1202
    %1240 = vmatprep.subr.mxu0 0.0
    %1241 = vmatpush1.msra.mxu0 %v1203
    %1242 = vmatprep.subr.mxu0 0.0
    %1243 = vmatpush1.msra.mxu0 %v1204
    %1244 = vmatprep.subr.mxu0 0.0
    %1245 = vmatpush1.msra.mxu0 %v1205
    %1246 = vmatprep.subr.mxu0 0.0
    %1247 = vmatpush1.msra.mxu0 %v1206
    %1248 = vmatprep.subr.mxu0 0.0
    %1249 = vmatpush1.msra.mxu0 %v1207
    %1250 = vmatprep.subr.mxu0 0.0
    %1251 = vmatpush1.msra.mxu0 %v1208
    %1252 = vmatprep.subr.mxu0 0.0
    %1253 = vmatpush1.msra.mxu0 %v1209
    %1254 = vmatprep.subr.mxu0 0.0
    %1255 = vmatpush1.msra.mxu0 %v1210
    %1256 = vmatprep.subr.mxu0 0.0
    %1257 = vmatpush1.msra.mxu0 %v1211
    %1258 = vmatprep.subr.mxu0 0.0
    %1259 = vmatpush1.msra.mxu0 %v1212
    %1260 = vmatprep.subr.mxu0 0.0
    %1261 = vmatpush1.msra.mxu0 %v1213
    %1262 = vmatprep.subr.mxu0 0.0
    %1263 = vmatpush1.msra.mxu0 %v1214
    %1264 = vmatprep.subr.mxu0 0.0
    %1265 = vmatpush1.msra.mxu0 %v1215
    %1266 = vmatprep.subr.mxu0 0.0
    %1267 = vmatpush1.msra.mxu0 %v1216
    %1268 = vmatprep.subr.mxu0 0.0
    %1269 = vmatpush1.msra.mxu0 %v1217
    %1270 = vmatprep.subr.mxu0 0.0
    %1271 = vmatpush1.msra.mxu0 %v1218
    %1272 = vmatprep.subr.mxu0 0.0
    %1273 = vmatpush1.msra.mxu0 %v1219
    %1274 = vmatprep.subr.mxu0 0.0
    %1275 = vmatpush1.msra.mxu0 %v1220
    %1276 = vmatprep.subr.mxu0 0.0
    %1277 = vmatpush1.msra.mxu0 %v1221
    %1278 = vmatprep.subr.mxu0 0.0
    %1279 = vmatpush1.msra.mxu0 %v1222
    %1280 = vmatprep.subr.mxu0 0.0
    %1281 = vmatpush1.msra.mxu0 %v1223
    %1282 = vmatprep.subr.mxu0 0.0
    %1283 = vmatpush1.msra.mxu0 %v1224
    %1284 = vmatprep.subr.mxu0 0.0
    %1285 = vmatpush1.msra.mxu0 %v1225
    %1286 = vmatprep.subr.mxu0 0.0
    %1287 = vmatpush1.msra.mxu0 %v1226
    %1288 = vmatprep.subr.mxu0 0.0
    %1289 = vmatpush1.msra.mxu0 %v1227
    %1290 = vmatprep.subr.mxu0 0.0
    %1291 = vmatpush1.msra.mxu0 %v1228
    %1292 = vmatprep.subr.mxu0 0.0
    %1293 = vmatpush1.msra.mxu0 %v1229
    %1294 = vmatprep.mubr.f32.mxu0 %v59
    %1295 = vmatmul.mubr.f32.gmra.mrb[0].mxu0 %v58
    %v1296 = vpop.f32.mrb[0].mxu0
    %v1297 = vadd.f32 0.0, %v1296
    %v1298 = vpop.f32.mrb[0].mxu0
    %1299 = vmatprep.mubr.f32.mxu0 %v61
    %1300 = vmatmul.mubr.f32.gmra.mrb[0].mxu0 %v60
    %v1301 = vpop.f32.mrb[0].mxu0
    %v1302 = vadd.f32 0.0, %v1301
    %v1303 = vpop.f32.mrb[0].mxu0
    %1304 = vmatprep.mubr.f32.mxu0 %v63
    %1305 = vmatmul.mubr.f32.gmra.mrb[0].mxu0 %v62
    %v1306 = vpop.f32.mrb[0].mxu0
    %v1307 = vadd.f32 0.0, %v1306
    %v1308 = vpop.f32.mrb[0].mxu0
    %1309 = vmatprep.mubr.f32.mxu0 %v65
    %1310 = vmatmul.mubr.f32.gmra.mrb[0].mxu0 %v64
    %v1311 = vpop.f32.mrb[0].mxu0
    %v1312 = vadd.f32 0.0, %v1311
    %v1313 = vpop.f32.mrb[0].mxu0
    %1314 = vmatprep.mubr.f32.mxu0 %v67
    %1315 = vmatmul.mubr.f32.gmra.mrb[0].mxu0 %v66
    %v1316 = vpop.f32.mrb[0].mxu0
    %v1317 = vadd.f32 0.0, %v1316
    %v1318 = vpop.f32.mrb[0].mxu0
    %1319 = vmatprep.mubr.f32.mxu0 %v69
    %1320 = vmatmul.mubr.f32.gmra.mrb[0].mxu0 %v68
    %v1321 = vpop.f32.mrb[0].mxu0
    %v1322 = vadd.f32 0.0, %v1321
    %v1323 = vpop.f32.mrb[0].mxu0
    %1324 = vmatprep.mubr.f32.mxu0 %v71
    %1325 = vmatmul.mubr.f32.gmra.mrb[0].mxu0 %v70
    %v1326 = vpop.f32.mrb[0].mxu0
    %v1327 = vadd.f32 0.0, %v1326
    %v1328 = vpop.f32.mrb[0].mxu0
    %1329 = vmatprep.mubr.f32.mxu0 %v73
    %1330 = vmatmul.mubr.f32.gmra.mrb[0].mxu0 %v72
    %v1331 = vpop.f32.mrb[0].mxu0
    %v1332 = vadd.f32 0.0, %v1331
    %v1333 = vpop.f32.mrb[0].mxu0
    %1334 = vmatprep.mubr.f32.mxu0 %v75
    %1335 = vmatmul.mubr.f32.gmra.mrb[0].mxu0 %v74
    %v1336 = vpop.f32.mrb[0].mxu0
    %v1337 = vadd.f32 0.0, %v1336
    %v1338 = vpop.f32.mrb[0].mxu0
    %1339 = vmatprep.mubr.f32.mxu0 %v77
    %1340 = vmatmul.mubr.f32.gmra.mrb[0].mxu0 %v76
    %v1341 = vpop.f32.mrb[0].mxu0
    %v1342 = vadd.f32 0.0, %v1341
    %v1343 = vpop.f32.mrb[0].mxu0
    %1344 = vmatprep.mubr.f32.mxu0 %v79
    %1345 = vmatmul.mubr.f32.gmra.mrb[0].mxu0 %v78
    %v1346 = vpop.f32.mrb[0].mxu0
    %v1347 = vadd.f32 0.0, %v1346
    %v1348 = vpop.f32.mrb[0].mxu0
    %1349 = vmatprep.mubr.f32.mxu0 %v81
    %1350 = vmatmul.mubr.f32.gmra.mrb[0].mxu0 %v80
    %v1351 = vpop.f32.mrb[0].mxu0
    %v1352 = vadd.f32 0.0, %v1351
    %v1353 = vpop.f32.mrb[0].mxu0
    %1354 = vmatprep.mubr.f32.mxu0 %v83
    %1355 = vmatmul.mubr.f32.gmra.mrb[0].mxu0 %v82
    %v1356 = vpop.f32.mrb[0].mxu0
    %v1357 = vadd.f32 0.0, %v1356
    %v1358 = vpop.f32.mrb[0].mxu0
    %1359 = vmatprep.mubr.f32.mxu0 %v85
    %1360 = vmatmul.mubr.f32.gmra.mrb[0].mxu0 %v84
    %v1361 = vpop.f32.mrb[0].mxu0
    %v1362 = vadd.f32 0.0, %v1361
    %v1363 = vpop.f32.mrb[0].mxu0
    %1364 = vmatprep.mubr.f32.mxu0 %v87
    %1365 = vmatmul.mubr.f32.gmra.mrb[0].mxu0 %v86
    %v1366 = vpop.f32.mrb[0].mxu0
    %v1367 = vadd.f32 0.0, %v1366
    %v1368 = vpop.f32.mrb[0].mxu0
    %1369 = vmatprep.mubr.f32.mxu0 %v89
    %1370 = vmatmul.mubr.f32.gmra.mrb[0].mxu0 %v88
    %v1371 = vpop.f32.mrb[0].mxu0
    %v1372 = vadd.f32 0.0, %v1371
    %v1373 = vpop.f32.mrb[0].mxu0
    %1374 = vmatprep.mubr.f32.mxu0 %v91
    %1375 = vmatmul.mubr.f32.gmra.mrb[0].mxu0 %v90
    %v1376 = vpop.f32.mrb[0].mxu0
    %v1377 = vadd.f32 0.0, %v1376
    %v1378 = vpop.f32.mrb[0].mxu0
    %1379 = vmatprep.mubr.f32.mxu0 %v93
    %1380 = vmatmul.mubr.f32.gmra.mrb[0].mxu0 %v92
    %v1381 = vpop.f32.mrb[0].mxu0
    %v1382 = vadd.f32 0.0, %v1381
    %v1383 = vpop.f32.mrb[0].mxu0
    %1384 = vmatprep.mubr.f32.mxu0 %v95
    %1385 = vmatmul.mubr.f32.gmra.mrb[0].mxu0 %v94
    %v1386 = vpop.f32.mrb[0].mxu0
    %v1387 = vadd.f32 0.0, %v1386
    %v1388 = vpop.f32.mrb[0].mxu0
    %1389 = vmatprep.mubr.f32.mxu0 %v97
    %1390 = vmatmul.mubr.f32.gmra.mrb[0].mxu0 %v96
    %v1391 = vpop.f32.mrb[0].mxu0
    %v1392 = vadd.f32 0.0, %v1391
    %v1393 = vpop.f32.mrb[0].mxu0
    %1394 = vmatprep.mubr.f32.mxu0 %v99
    %1395 = vmatmul.mubr.f32.gmra.mrb[0].mxu0 %v98
    %v1396 = vpop.f32.mrb[0].mxu0
    %v1397 = vadd.f32 0.0, %v1396
    %v1398 = vpop.f32.mrb[0].mxu0
    %1399 = vmatprep.mubr.f32.mxu0 %v101
    %1400 = vmatmul.mubr.f32.gmra.mrb[0].mxu0 %v100
    %v1401 = vpop.f32.mrb[0].mxu0
    %v1402 = vadd.f32 0.0, %v1401
    %v1403 = vpop.f32.mrb[0].mxu0
    %1404 = vmatprep.mubr.f32.mxu0 %v103
    %1405 = vmatmul.mubr.f32.gmra.mrb[0].mxu0 %v102
    %v1406 = vpop.f32.mrb[0].mxu0
    %v1407 = vadd.f32 0.0, %v1406
    %v1408 = vpop.f32.mrb[0].mxu0
    %1409 = vmatprep.mubr.f32.mxu0 %v105
    %1410 = vmatmul.mubr.f32.gmra.mrb[0].mxu0 %v104
    %v1411 = vpop.f32.mrb[0].mxu0
    %v1412 = vadd.f32 0.0, %v1411
    %v1413 = vpop.f32.mrb[0].mxu0
    %1414 = vmatprep.mubr.f32.mxu0 %v107
    %1415 = vmatmul.mubr.f32.gmra.mrb[0].mxu0 %v106
    %v1416 = vpop.f32.mrb[0].mxu0
    %v1417 = vadd.f32 0.0, %v1416
    %v1418 = vpop.f32.mrb[0].mxu0
    %1419 = vmatprep.mubr.f32.mxu0 %v109
    %1420 = vmatmul.mubr.f32.gmra.mrb[0].mxu0 %v108
    %v1421 = vpop.f32.mrb[0].mxu0
    %v1422 = vadd.f32 0.0, %v1421
    %v1423 = vpop.f32.mrb[0].mxu0
    %1424 = vmatprep.mubr.f32.mxu0 %v111
    %1425 = vmatmul.mubr.f32.gmra.mrb[0].mxu0 %v110
    %v1426 = vpop.f32.mrb[0].mxu0
    %v1427 = vadd.f32 0.0, %v1426
    %v1428 = vpop.f32.mrb[0].mxu0
    %1429 = vmatprep.mubr.f32.mxu0 %v113
    %1430 = vmatmul.mubr.f32.gmra.mrb[0].mxu0 %v112
    %v1431 = vpop.f32.mrb[0].mxu0
    %v1432 = vadd.f32 0.0, %v1431
    %v1433 = vpop.f32.mrb[0].mxu0
    %1434 = vmatprep.mubr.f32.mxu0 %v115
    %1435 = vmatmul.mubr.f32.gmra.mrb[0].mxu0 %v114
    %v1436 = vpop.f32.mrb[0].mxu0
    %v1437 = vadd.f32 0.0, %v1436
    %v1438 = vpop.f32.mrb[0].mxu0
    %1439 = vmatprep.mubr.f32.mxu0 %v117
    %1440 = vmatmul.mubr.f32.gmra.mrb[0].mxu0 %v116
    %v1441 = vpop.f32.mrb[0].mxu0
    %v1442 = vadd.f32 0.0, %v1441
    %v1443 = vpop.f32.mrb[0].mxu0
    %1444 = vmatprep.mubr.f32.mxu0 %v119
    %1445 = vmatmul.mubr.f32.gmra.mrb[0].mxu0 %v118
    %v1446 = vpop.f32.mrb[0].mxu0
    %v1447 = vadd.f32 0.0, %v1446
    %v1448 = vpop.f32.mrb[0].mxu0
    %1449 = vmatprep.mubr.f32.mxu0 %v121
    %1450 = vmatmul.mubr.f32.gmra.mrb[0].mxu0 %v120
    %v1451 = vpop.f32.mrb[0].mxu0
    %v1452 = vadd.f32 0.0, %v1451
    %v1453 = vpop.f32.mrb[0].mxu0
    %1454 = vdwg.mxu0
    %s1455 = scalar_lea.vmem [#allocation6], 256
    %v1456 = vld [vmem:[%s1455] sm:$0xff]
    %v1457 = vld [vmem:[%s1455 + $0x8] sm:$0xff]
    %v1458 = vld [vmem:[%s1455 + $0x10] sm:$0xff]
    %v1459 = vld [vmem:[%s1455 + $0x18] sm:$0xff]
    %v1460 = vld [vmem:[%s1455 + $0x20] sm:$0xff]
    %v1461 = vld [vmem:[%s1455 + $0x28] sm:$0xff]
    %v1462 = vld [vmem:[%s1455 + $0x30] sm:$0xff]
    %v1463 = vld [vmem:[%s1455 + $0x38] sm:$0xff]
    %v1464 = vld [vmem:[%s1455 + $0x40] sm:$0xff]
    %v1465 = vld [vmem:[%s1455 + $0x48] sm:$0xff]
    %v1466 = vld [vmem:[%s1455 + $0x50] sm:$0xff]
    %v1467 = vld [vmem:[%s1455 + $0x58] sm:$0xff]
    %v1468 = vld [vmem:[%s1455 + $0x60] sm:$0xff]
    %v1469 = vld [vmem:[%s1455 + $0x68] sm:$0xff]
    %v1470 = vld [vmem:[%s1455 + $0x70] sm:$0xff]
    %v1471 = vld [vmem:[%s1455 + $0x78] sm:$0xff]
    %s1472 = scalar_lea.vmem %s3, 2
    %v1473 = vld [vmem:[%s1472] sm:$0x1]
    %v1475 = vlaneseq
    %v1476 = vshrl.u32 %v1475, 7
    %v1477 = vsub.s32 0, %v1476
    %v1478 = vrot.slane %v1473, %v1477
    %1480 = vmatprep.subr.mxu0 0.0
    %1481 = vmatpush1.msra.mxu0 %v1456
    %1482 = vmatprep.subr.mxu0 0.0
    %1483 = vmatpush1.msra.mxu0 %v1457
    %1484 = vmatprep.subr.mxu0 0.0
    %1485 = vmatpush1.msra.mxu0 %v1458
    %1486 = vmatprep.subr.mxu0 0.0
    %1487 = vmatpush1.msra.mxu0 %v1459
    %1488 = vmatprep.subr.mxu0 0.0
    %1489 = vmatpush1.msra.mxu0 %v1460
    %1490 = vmatprep.subr.mxu0 0.0
    %1491 = vmatpush1.msra.mxu0 %v1461
    %1492 = vmatprep.subr.mxu0 0.0
    %1493 = vmatpush1.msra.mxu0 %v1462
    %1494 = vmatprep.subr.mxu0 0.0
    %1495 = vmatpush1.msra.mxu0 %v1463
    %1496 = vmatprep.subr.mxu0 0.0
    %1497 = vmatpush1.msra.mxu0 %v1464
    %1498 = vmatprep.subr.mxu0 0.0
    %1499 = vmatpush1.msra.mxu0 %v1465
    %1500 = vmatprep.subr.mxu0 0.0
    %1501 = vmatpush1.msra.mxu0 %v1466
    %1502 = vmatprep.subr.mxu0 0.0
    %1503 = vmatpush1.msra.mxu0 %v1467
    %1504 = vmatprep.subr.mxu0 0.0
    %1505 = vmatpush1.msra.mxu0 %v1468
    %1506 = vmatprep.subr.mxu0 0.0
    %1507 = vmatpush1.msra.mxu0 %v1469
    %1508 = vmatprep.subr.mxu0 0.0
    %1509 = vmatpush1.msra.mxu0 %v1470
    %1510 = vmatprep.subr.mxu0 0.0
    %1511 = vmatpush1.msra.mxu0 %v1471
    %1512 = vmatprep.subr.mxu0 0.0
    %1513 = vmatpush1.msra.mxu0 0.0
    %1514 = vmatprep.subr.mxu0 0.0
    %1515 = vmatpush1.msra.mxu0 0.0
    %1516 = vmatprep.subr.mxu0 0.0
    %1517 = vmatpush1.msra.mxu0 0.0
    %1518 = vmatprep.subr.mxu0 0.0
    %1519 = vmatpush1.msra.mxu0 0.0
    %1520 = vmatprep.subr.mxu0 0.0
    %1521 = vmatpush1.msra.mxu0 0.0
    %1522 = vmatprep.subr.mxu0 0.0
    %1523 = vmatpush1.msra.mxu0 0.0
    %1524 = vmatprep.subr.mxu0 0.0
    %1525 = vmatpush1.msra.mxu0 0.0
    %1526 = vmatprep.subr.mxu0 0.0
    %1527 = vmatpush1.msra.mxu0 0.0
    %1528 = vmatprep.subr.mxu0 0.0
    %1529 = vmatpush1.msra.mxu0 0.0
    %1530 = vmatprep.subr.mxu0 0.0
    %1531 = vmatpush1.msra.mxu0 0.0
    %1532 = vmatprep.subr.mxu0 0.0
    %1533 = vmatpush1.msra.mxu0 0.0
    %1534 = vmatprep.subr.mxu0 0.0
    %1535 = vmatpush1.msra.mxu0 0.0
    %1536 = vmatprep.subr.mxu0 0.0
    %1537 = vmatpush1.msra.mxu0 0.0
    %1538 = vmatprep.subr.mxu0 0.0
    %1539 = vmatpush1.msra.mxu0 0.0
    %1540 = vmatprep.subr.mxu0 0.0
    %1541 = vmatpush1.msra.mxu0 0.0
    %1542 = vmatprep.subr.mxu0 0.0
    %1543 = vmatpush1.msra.mxu0 0.0
    %1544 = vmatprep.mubr.f32.mxu0 0.0
    %1545 = vmatmul.mubr.f32.gmra.mrb[0].mxu0 %v1297
    %v1546 = vpop.f32.mrb[0].mxu0
    %v1547 = vadd.f32 %v1478, %v1546
    %v1548 = vpop.f32.mrb[0].mxu0
    %1549 = vmatprep.mubr.f32.mxu0 0.0
    %1550 = vmatmul.mubr.f32.gmra.mrb[0].mxu0 %v1302
    %v1551 = vpop.f32.mrb[0].mxu0
    %v1552 = vadd.f32 %v1478, %v1551
    %v1553 = vpop.f32.mrb[0].mxu0
    %1554 = vmatprep.mubr.f32.mxu0 0.0
    %1555 = vmatmul.mubr.f32.gmra.mrb[0].mxu0 %v1307
    %v1556 = vpop.f32.mrb[0].mxu0
    %v1557 = vadd.f32 %v1478, %v1556
    %v1558 = vpop.f32.mrb[0].mxu0
    %1559 = vmatprep.mubr.f32.mxu0 0.0
    %1560 = vmatmul.mubr.f32.gmra.mrb[0].mxu0 %v1312
    %v1561 = vpop.f32.mrb[0].mxu0
    %v1562 = vadd.f32 %v1478, %v1561
    %v1563 = vpop.f32.mrb[0].mxu0
    %1564 = vmatprep.mubr.f32.mxu0 0.0
    %1565 = vmatmul.mubr.f32.gmra.mrb[0].mxu0 %v1317
    %v1566 = vpop.f32.mrb[0].mxu0
    %v1567 = vadd.f32 %v1478, %v1566
    %v1568 = vpop.f32.mrb[0].mxu0
    %1569 = vmatprep.mubr.f32.mxu0 0.0
    %1570 = vmatmul.mubr.f32.gmra.mrb[0].mxu0 %v1322
    %v1571 = vpop.f32.mrb[0].mxu0
    %v1572 = vadd.f32 %v1478, %v1571
    %v1573 = vpop.f32.mrb[0].mxu0
    %1574 = vmatprep.mubr.f32.mxu0 0.0
    %1575 = vmatmul.mubr.f32.gmra.mrb[0].mxu0 %v1327
    %v1576 = vpop.f32.mrb[0].mxu0
    %v1577 = vadd.f32 %v1478, %v1576
    %v1578 = vpop.f32.mrb[0].mxu0
    %1579 = vmatprep.mubr.f32.mxu0 0.0
    %1580 = vmatmul.mubr.f32.gmra.mrb[0].mxu0 %v1332
    %v1581 = vpop.f32.mrb[0].mxu0
    %v1582 = vadd.f32 %v1478, %v1581
    %v1583 = vpop.f32.mrb[0].mxu0
    %1584 = vmatprep.mubr.f32.mxu0 0.0
    %1585 = vmatmul.mubr.f32.gmra.mrb[0].mxu0 %v1337
    %v1586 = vpop.f32.mrb[0].mxu0
    %v1587 = vadd.f32 %v1478, %v1586
    %v1588 = vpop.f32.mrb[0].mxu0
    %1589 = vmatprep.mubr.f32.mxu0 0.0
    %1590 = vmatmul.mubr.f32.gmra.mrb[0].mxu0 %v1342
    %v1591 = vpop.f32.mrb[0].mxu0
    %v1592 = vadd.f32 %v1478, %v1591
    %v1593 = vpop.f32.mrb[0].mxu0
    %1594 = vmatprep.mubr.f32.mxu0 0.0
    %1595 = vmatmul.mubr.f32.gmra.mrb[0].mxu0 %v1347
    %v1596 = vpop.f32.mrb[0].mxu0
    %v1597 = vadd.f32 %v1478, %v1596
    %v1598 = vpop.f32.mrb[0].mxu0
    %1599 = vmatprep.mubr.f32.mxu0 0.0
    %1600 = vmatmul.mubr.f32.gmra.mrb[0].mxu0 %v1352
    %v1601 = vpop.f32.mrb[0].mxu0
    %v1602 = vadd.f32 %v1478, %v1601
    %v1603 = vpop.f32.mrb[0].mxu0
    %1604 = vmatprep.mubr.f32.mxu0 0.0
    %1605 = vmatmul.mubr.f32.gmra.mrb[0].mxu0 %v1357
    %v1606 = vpop.f32.mrb[0].mxu0
    %v1607 = vadd.f32 %v1478, %v1606
    %v1608 = vpop.f32.mrb[0].mxu0
    %1609 = vmatprep.mubr.f32.mxu0 0.0
    %1610 = vmatmul.mubr.f32.gmra.mrb[0].mxu0 %v1362
    %v1611 = vpop.f32.mrb[0].mxu0
    %v1612 = vadd.f32 %v1478, %v1611
    %v1613 = vpop.f32.mrb[0].mxu0
    %1614 = vmatprep.mubr.f32.mxu0 0.0
    %1615 = vmatmul.mubr.f32.gmra.mrb[0].mxu0 %v1367
    %v1616 = vpop.f32.mrb[0].mxu0
    %v1617 = vadd.f32 %v1478, %v1616
    %v1618 = vpop.f32.mrb[0].mxu0
    %1619 = vmatprep.mubr.f32.mxu0 0.0
    %1620 = vmatmul.mubr.f32.gmra.mrb[0].mxu0 %v1372
    %v1621 = vpop.f32.mrb[0].mxu0
    %v1622 = vadd.f32 %v1478, %v1621
    %v1623 = vpop.f32.mrb[0].mxu0
    %1624 = vmatprep.mubr.f32.mxu0 0.0
    %1625 = vmatmul.mubr.f32.gmra.mrb[0].mxu0 %v1377
    %v1626 = vpop.f32.mrb[0].mxu0
    %v1627 = vadd.f32 %v1478, %v1626
    %v1628 = vpop.f32.mrb[0].mxu0
    %1629 = vmatprep.mubr.f32.mxu0 0.0
    %1630 = vmatmul.mubr.f32.gmra.mrb[0].mxu0 %v1382
    %v1631 = vpop.f32.mrb[0].mxu0
    %v1632 = vadd.f32 %v1478, %v1631
    %v1633 = vpop.f32.mrb[0].mxu0
    %1634 = vmatprep.mubr.f32.mxu0 0.0
    %1635 = vmatmul.mubr.f32.gmra.mrb[0].mxu0 %v1387
    %v1636 = vpop.f32.mrb[0].mxu0
    %v1637 = vadd.f32 %v1478, %v1636
    %v1638 = vpop.f32.mrb[0].mxu0
    %1639 = vmatprep.mubr.f32.mxu0 0.0
    %1640 = vmatmul.mubr.f32.gmra.mrb[0].mxu0 %v1392
    %v1641 = vpop.f32.mrb[0].mxu0
    %v1642 = vadd.f32 %v1478, %v1641
    %v1643 = vpop.f32.mrb[0].mxu0
    %1644 = vmatprep.mubr.f32.mxu0 0.0
    %1645 = vmatmul.mubr.f32.gmra.mrb[0].mxu0 %v1397
    %v1646 = vpop.f32.mrb[0].mxu0
    %v1647 = vadd.f32 %v1478, %v1646
    %v1648 = vpop.f32.mrb[0].mxu0
    %1649 = vmatprep.mubr.f32.mxu0 0.0
    %1650 = vmatmul.mubr.f32.gmra.mrb[0].mxu0 %v1402
    %v1651 = vpop.f32.mrb[0].mxu0
    %v1652 = vadd.f32 %v1478, %v1651
    %v1653 = vpop.f32.mrb[0].mxu0
    %1654 = vmatprep.mubr.f32.mxu0 0.0
    %1655 = vmatmul.mubr.f32.gmra.mrb[0].mxu0 %v1407
    %v1656 = vpop.f32.mrb[0].mxu0
    %v1657 = vadd.f32 %v1478, %v1656
    %v1658 = vpop.f32.mrb[0].mxu0
    %1659 = vmatprep.mubr.f32.mxu0 0.0
    %1660 = vmatmul.mubr.f32.gmra.mrb[0].mxu0 %v1412
    %v1661 = vpop.f32.mrb[0].mxu0
    %v1662 = vadd.f32 %v1478, %v1661
    %v1663 = vpop.f32.mrb[0].mxu0
    %1664 = vmatprep.mubr.f32.mxu0 0.0
    %1665 = vmatmul.mubr.f32.gmra.mrb[0].mxu0 %v1417
    %v1666 = vpop.f32.mrb[0].mxu0
    %v1667 = vadd.f32 %v1478, %v1666
    %v1668 = vpop.f32.mrb[0].mxu0
    %1669 = vmatprep.mubr.f32.mxu0 0.0
    %1670 = vmatmul.mubr.f32.gmra.mrb[0].mxu0 %v1422
    %v1671 = vpop.f32.mrb[0].mxu0
    %v1672 = vadd.f32 %v1478, %v1671
    %v1673 = vpop.f32.mrb[0].mxu0
    %1674 = vmatprep.mubr.f32.mxu0 0.0
    %1675 = vmatmul.mubr.f32.gmra.mrb[0].mxu0 %v1427
    %v1676 = vpop.f32.mrb[0].mxu0
    %v1677 = vadd.f32 %v1478, %v1676
    %v1678 = vpop.f32.mrb[0].mxu0
    %1679 = vmatprep.mubr.f32.mxu0 0.0
    %1680 = vmatmul.mubr.f32.gmra.mrb[0].mxu0 %v1432
    %v1681 = vpop.f32.mrb[0].mxu0
    %v1682 = vadd.f32 %v1478, %v1681
    %v1683 = vpop.f32.mrb[0].mxu0
    %1684 = vmatprep.mubr.f32.mxu0 0.0
    %1685 = vmatmul.mubr.f32.gmra.mrb[0].mxu0 %v1437
    %v1686 = vpop.f32.mrb[0].mxu0
    %v1687 = vadd.f32 %v1478, %v1686
    %v1688 = vpop.f32.mrb[0].mxu0
    %1689 = vmatprep.mubr.f32.mxu0 0.0
    %1690 = vmatmul.mubr.f32.gmra.mrb[0].mxu0 %v1442
    %v1691 = vpop.f32.mrb[0].mxu0
    %v1692 = vadd.f32 %v1478, %v1691
    %v1693 = vpop.f32.mrb[0].mxu0
    %1694 = vmatprep.mubr.f32.mxu0 0.0
    %1695 = vmatmul.mubr.f32.gmra.mrb[0].mxu0 %v1447
    %v1696 = vpop.f32.mrb[0].mxu0
    %v1697 = vadd.f32 %v1478, %v1696
    %v1698 = vpop.f32.mrb[0].mxu0
    %1699 = vmatprep.mubr.f32.mxu0 0.0
    %1700 = vmatmul.mubr.f32.gmra.mrb[0].mxu0 %v1452
    %v1701 = vpop.f32.mrb[0].mxu0
    %v1702 = vadd.f32 %v1478, %v1701
    %v1703 = vpop.f32.mrb[0].mxu0
    %1704 = vdwg.mxu0
    %v1705 = vmax.f32 %v1547, 0.0
    %v1706 = vmax.f32 %v1552, 0.0
    %v1707 = vmax.f32 %v1557, 0.0
    %v1708 = vmax.f32 %v1562, 0.0
    %v1709 = vmax.f32 %v1567, 0.0
    %v1710 = vmax.f32 %v1572, 0.0
    %v1711 = vmax.f32 %v1577, 0.0
    %v1712 = vmax.f32 %v1582, 0.0
    %v1713 = vmax.f32 %v1587, 0.0
    %v1714 = vmax.f32 %v1592, 0.0
    %v1715 = vmax.f32 %v1597, 0.0
    %v1716 = vmax.f32 %v1602, 0.0
    %v1717 = vmax.f32 %v1607, 0.0
    %v1718 = vmax.f32 %v1612, 0.0
    %v1719 = vmax.f32 %v1617, 0.0
    %v1720 = vmax.f32 %v1622, 0.0
    %v1721 = vmax.f32 %v1627, 0.0
    %v1722 = vmax.f32 %v1632, 0.0
    %v1723 = vmax.f32 %v1637, 0.0
    %v1724 = vmax.f32 %v1642, 0.0
    %v1725 = vmax.f32 %v1647, 0.0
    %v1726 = vmax.f32 %v1652, 0.0
    %v1727 = vmax.f32 %v1657, 0.0
    %v1728 = vmax.f32 %v1662, 0.0
    %v1729 = vmax.f32 %v1667, 0.0
    %v1730 = vmax.f32 %v1672, 0.0
    %v1731 = vmax.f32 %v1677, 0.0
    %v1732 = vmax.f32 %v1682, 0.0
    %v1733 = vmax.f32 %v1687, 0.0
    %v1734 = vmax.f32 %v1692, 0.0
    %v1735 = vmax.f32 %v1697, 0.0
    %v1736 = vmax.f32 %v1702, 0.0
    %v1737 = vadd.f32 %v1705, %v122
    %v1738 = vadd.f32 %v1706, %v123
    %v1739 = vadd.f32 %v1707, %v124
    %v1740 = vadd.f32 %v1708, %v125
    %v1741 = vadd.f32 %v1709, %v126
    %v1742 = vadd.f32 %v1710, %v127
    %v1743 = vadd.f32 %v1711, %v128
    %v1744 = vadd.f32 %v1712, %v129
    %v1745 = vadd.f32 %v1713, %v130
    %v1746 = vadd.f32 %v1714, %v131
    %v1747 = vadd.f32 %v1715, %v132
    %v1748 = vadd.f32 %v1716, %v133
    %v1749 = vadd.f32 %v1717, %v134
    %v1750 = vadd.f32 %v1718, %v135
    %v1751 = vadd.f32 %v1719, %v136
    %v1752 = vadd.f32 %v1720, %v137
    %v1753 = vadd.f32 %v1721, %v138
    %v1754 = vadd.f32 %v1722, %v139
    %v1755 = vadd.f32 %v1723, %v140
    %v1756 = vadd.f32 %v1724, %v141
    %v1757 = vadd.f32 %v1725, %v142
    %v1758 = vadd.f32 %v1726, %v143
    %v1759 = vadd.f32 %v1727, %v144
    %v1760 = vadd.f32 %v1728, %v145
    %v1761 = vadd.f32 %v1729, %v146
    %v1762 = vadd.f32 %v1730, %v147
    %v1763 = vadd.f32 %v1731, %v148
    %v1764 = vadd.f32 %v1732, %v149
    %v1765 = vadd.f32 %v1733, %v150
    %v1766 = vadd.f32 %v1734, %v151
    %v1767 = vadd.f32 %v1735, %v152
    %v1768 = vadd.f32 %v1736, %v153
    %1769 = vmatprep.subr.mxu0 0.0
    %1770 = vmatpush1.msra.mxu0 %v1737
    %1771 = vmatprep.subr.mxu0 0.0
    %1772 = vmatpush1.msra.mxu0 %v1738
    %1773 = vmatprep.subr.mxu0 0.0
    %1774 = vmatpush1.msra.mxu0 %v1739
    %1775 = vmatprep.subr.mxu0 0.0
    %1776 = vmatpush1.msra.mxu0 %v1740
    %1777 = vmatprep.subr.mxu0 0.0
    %1778 = vmatpush1.msra.mxu0 %v1741
    %1779 = vmatprep.subr.mxu0 0.0
    %1780 = vmatpush1.msra.mxu0 %v1742
    %1781 = vmatprep.subr.mxu0 0.0
    %1782 = vmatpush1.msra.mxu0 %v1743
    %1783 = vmatprep.subr.mxu0 0.0
    %1784 = vmatpush1.msra.mxu0 %v1744
    %1785 = vmatprep.subr.mxu0 0.0
    %1786 = vmatpush1.msra.mxu0 %v1745
    %1787 = vmatprep.subr.mxu0 0.0
    %1788 = vmatpush1.msra.mxu0 %v1746
    %1789 = vmatprep.subr.mxu0 0.0
    %1790 = vmatpush1.msra.mxu0 %v1747
    %1791 = vmatprep.subr.mxu0 0.0
    %1792 = vmatpush1.msra.mxu0 %v1748
    %1793 = vmatprep.subr.mxu0 0.0
    %1794 = vmatpush1.msra.mxu0 %v1749
    %1795 = vmatprep.subr.mxu0 0.0
    %1796 = vmatpush1.msra.mxu0 %v1750
    %1797 = vmatprep.subr.mxu0 0.0
    %1798 = vmatpush1.msra.mxu0 %v1751
    %1799 = vmatprep.subr.mxu0 0.0
    %1800 = vmatpush1.msra.mxu0 %v1752
    %1801 = vmatprep.subr.mxu0 0.0
    %1802 = vmatpush1.msra.mxu0 %v1753
    %1803 = vmatprep.subr.mxu0 0.0
    %1804 = vmatpush1.msra.mxu0 %v1754
    %1805 = vmatprep.subr.mxu0 0.0
    %1806 = vmatpush1.msra.mxu0 %v1755
    %1807 = vmatprep.subr.mxu0 0.0
    %1808 = vmatpush1.msra.mxu0 %v1756
    %1809 = vmatprep.subr.mxu0 0.0
    %1810 = vmatpush1.msra.mxu0 %v1757
    %1811 = vmatprep.subr.mxu0 0.0
    %1812 = vmatpush1.msra.mxu0 %v1758
    %1813 = vmatprep.subr.mxu0 0.0
    %1814 = vmatpush1.msra.mxu0 %v1759
    %1815 = vmatprep.subr.mxu0 0.0
    %1816 = vmatpush1.msra.mxu0 %v1760
    %1817 = vmatprep.subr.mxu0 0.0
    %1818 = vmatpush1.msra.mxu0 %v1761
    %1819 = vmatprep.subr.mxu0 0.0
    %1820 = vmatpush1.msra.mxu0 %v1762
    %1821 = vmatprep.subr.mxu0 0.0
    %1822 = vmatpush1.msra.mxu0 %v1763
    %1823 = vmatprep.subr.mxu0 0.0
    %1824 = vmatpush1.msra.mxu0 %v1764
    %1825 = vmatprep.subr.mxu0 0.0
    %1826 = vmatpush1.msra.mxu0 %v1765
    %1827 = vmatprep.subr.mxu0 0.0
    %1828 = vmatpush1.msra.mxu0 %v1766
    %1829 = vmatprep.subr.mxu0 0.0
    %1830 = vmatpush1.msra.mxu0 %v1767
    %1831 = vmatprep.subr.mxu0 0.0
    %1832 = vmatpush1.msra.mxu0 %v1768
    %1833 = vmatprep.mubr.f32.mxu0 %v59
    %1834 = vmatmul.mubr.f32.gmra.mrb[0].mxu0 %v58
    %v1835 = vpop.f32.mrb[0].mxu0
    %v1836 = vadd.f32 0.0, %v1835
    %v1837 = vpop.f32.mrb[0].mxu0
    %1838 = vmatprep.mubr.f32.mxu0 %v61
    %1839 = vmatmul.mubr.f32.gmra.mrb[0].mxu0 %v60
    %v1840 = vpop.f32.mrb[0].mxu0
    %v1841 = vadd.f32 0.0, %v1840
    %v1842 = vpop.f32.mrb[0].mxu0
    %1843 = vmatprep.mubr.f32.mxu0 %v63
    %1844 = vmatmul.mubr.f32.gmra.mrb[0].mxu0 %v62
    %v1845 = vpop.f32.mrb[0].mxu0
    %v1846 = vadd.f32 0.0, %v1845
    %v1847 = vpop.f32.mrb[0].mxu0
    %1848 = vmatprep.mubr.f32.mxu0 %v65
    %1849 = vmatmul.mubr.f32.gmra.mrb[0].mxu0 %v64
    %v1850 = vpop.f32.mrb[0].mxu0
    %v1851 = vadd.f32 0.0, %v1850
    %v1852 = vpop.f32.mrb[0].mxu0
    %1853 = vmatprep.mubr.f32.mxu0 %v67
    %1854 = vmatmul.mubr.f32.gmra.mrb[0].mxu0 %v66
    %v1855 = vpop.f32.mrb[0].mxu0
    %v1856 = vadd.f32 0.0, %v1855
    %v1857 = vpop.f32.mrb[0].mxu0
    %1858 = vmatprep.mubr.f32.mxu0 %v69
    %1859 = vmatmul.mubr.f32.gmra.mrb[0].mxu0 %v68
    %v1860 = vpop.f32.mrb[0].mxu0
    %v1861 = vadd.f32 0.0, %v1860
    %v1862 = vpop.f32.mrb[0].mxu0
    %1863 = vmatprep.mubr.f32.mxu0 %v71
    %1864 = vmatmul.mubr.f32.gmra.mrb[0].mxu0 %v70
    %v1865 = vpop.f32.mrb[0].mxu0
    %v1866 = vadd.f32 0.0, %v1865
    %v1867 = vpop.f32.mrb[0].mxu0
    %1868 = vmatprep.mubr.f32.mxu0 %v73
    %1869 = vmatmul.mubr.f32.gmra.mrb[0].mxu0 %v72
    %v1870 = vpop.f32.mrb[0].mxu0
    %v1871 = vadd.f32 0.0, %v1870
    %v1872 = vpop.f32.mrb[0].mxu0
    %1873 = vmatprep.mubr.f32.mxu0 %v75
    %1874 = vmatmul.mubr.f32.gmra.mrb[0].mxu0 %v74
    %v1875 = vpop.f32.mrb[0].mxu0
    %v1876 = vadd.f32 0.0, %v1875
    %v1877 = vpop.f32.mrb[0].mxu0
    %1878 = vmatprep.mubr.f32.mxu0 %v77
    %1879 = vmatmul.mubr.f32.gmra.mrb[0].mxu0 %v76
    %v1880 = vpop.f32.mrb[0].mxu0
    %v1881 = vadd.f32 0.0, %v1880
    %v1882 = vpop.f32.mrb[0].mxu0
    %1883 = vmatprep.mubr.f32.mxu0 %v79
    %1884 = vmatmul.mubr.f32.gmra.mrb[0].mxu0 %v78
    %v1885 = vpop.f32.mrb[0].mxu0
    %v1886 = vadd.f32 0.0, %v1885
    %v1887 = vpop.f32.mrb[0].mxu0
    %1888 = vmatprep.mubr.f32.mxu0 %v81
    %1889 = vmatmul.mubr.f32.gmra.mrb[0].mxu0 %v80
    %v1890 = vpop.f32.mrb[0].mxu0
    %v1891 = vadd.f32 0.0, %v1890
    %v1892 = vpop.f32.mrb[0].mxu0
    %1893 = vmatprep.mubr.f32.mxu0 %v83
    %1894 = vmatmul.mubr.f32.gmra.mrb[0].mxu0 %v82
    %v1895 = vpop.f32.mrb[0].mxu0
    %v1896 = vadd.f32 0.0, %v1895
    %v1897 = vpop.f32.mrb[0].mxu0
    %1898 = vmatprep.mubr.f32.mxu0 %v85
    %1899 = vmatmul.mubr.f32.gmra.mrb[0].mxu0 %v84
    %v1900 = vpop.f32.mrb[0].mxu0
    %v1901 = vadd.f32 0.0, %v1900
    %v1902 = vpop.f32.mrb[0].mxu0
    %1903 = vmatprep.mubr.f32.mxu0 %v87
    %1904 = vmatmul.mubr.f32.gmra.mrb[0].mxu0 %v86
    %v1905 = vpop.f32.mrb[0].mxu0
    %v1906 = vadd.f32 0.0, %v1905
    %v1907 = vpop.f32.mrb[0].mxu0
    %1908 = vmatprep.mubr.f32.mxu0 %v89
    %1909 = vmatmul.mubr.f32.gmra.mrb[0].mxu0 %v88
    %v1910 = vpop.f32.mrb[0].mxu0
    %v1911 = vadd.f32 0.0, %v1910
    %v1912 = vpop.f32.mrb[0].mxu0
    %1913 = vmatprep.mubr.f32.mxu0 %v91
    %1914 = vmatmul.mubr.f32.gmra.mrb[0].mxu0 %v90
    %v1915 = vpop.f32.mrb[0].mxu0
    %v1916 = vadd.f32 0.0, %v1915
    %v1917 = vpop.f32.mrb[0].mxu0
    %1918 = vmatprep.mubr.f32.mxu0 %v93
    %1919 = vmatmul.mubr.f32.gmra.mrb[0].mxu0 %v92
    %v1920 = vpop.f32.mrb[0].mxu0
    %v1921 = vadd.f32 0.0, %v1920
    %v1922 = vpop.f32.mrb[0].mxu0
    %1923 = vmatprep.mubr.f32.mxu0 %v95
    %1924 = vmatmul.mubr.f32.gmra.mrb[0].mxu0 %v94
    %v1925 = vpop.f32.mrb[0].mxu0
    %v1926 = vadd.f32 0.0, %v1925
    %v1927 = vpop.f32.mrb[0].mxu0
    %1928 = vmatprep.mubr.f32.mxu0 %v97
    %1929 = vmatmul.mubr.f32.gmra.mrb[0].mxu0 %v96
    %v1930 = vpop.f32.mrb[0].mxu0
    %v1931 = vadd.f32 0.0, %v1930
    %v1932 = vpop.f32.mrb[0].mxu0
    %1933 = vmatprep.mubr.f32.mxu0 %v99
    %1934 = vmatmul.mubr.f32.gmra.mrb[0].mxu0 %v98
    %v1935 = vpop.f32.mrb[0].mxu0
    %v1936 = vadd.f32 0.0, %v1935
    %v1937 = vpop.f32.mrb[0].mxu0
    %1938 = vmatprep.mubr.f32.mxu0 %v101
    %1939 = vmatmul.mubr.f32.gmra.mrb[0].mxu0 %v100
    %v1940 = vpop.f32.mrb[0].mxu0
    %v1941 = vadd.f32 0.0, %v1940
    %v1942 = vpop.f32.mrb[0].mxu0
    %1943 = vmatprep.mubr.f32.mxu0 %v103
    %1944 = vmatmul.mubr.f32.gmra.mrb[0].mxu0 %v102
    %v1945 = vpop.f32.mrb[0].mxu0
    %v1946 = vadd.f32 0.0, %v1945
    %v1947 = vpop.f32.mrb[0].mxu0
    %1948 = vmatprep.mubr.f32.mxu0 %v105
    %1949 = vmatmul.mubr.f32.gmra.mrb[0].mxu0 %v104
    %v1950 = vpop.f32.mrb[0].mxu0
    %v1951 = vadd.f32 0.0, %v1950
    %v1952 = vpop.f32.mrb[0].mxu0
    %1953 = vmatprep.mubr.f32.mxu0 %v107
    %1954 = vmatmul.mubr.f32.gmra.mrb[0].mxu0 %v106
    %v1955 = vpop.f32.mrb[0].mxu0
    %v1956 = vadd.f32 0.0, %v1955
    %v1957 = vpop.f32.mrb[0].mxu0
    %1958 = vmatprep.mubr.f32.mxu0 %v109
    %1959 = vmatmul.mubr.f32.gmra.mrb[0].mxu0 %v108
    %v1960 = vpop.f32.mrb[0].mxu0
    %v1961 = vadd.f32 0.0, %v1960
    %v1962 = vpop.f32.mrb[0].mxu0
    %1963 = vmatprep.mubr.f32.mxu0 %v111
    %1964 = vmatmul.mubr.f32.gmra.mrb[0].mxu0 %v110
    %v1965 = vpop.f32.mrb[0].mxu0
    %v1966 = vadd.f32 0.0, %v1965
    %v1967 = vpop.f32.mrb[0].mxu0
    %1968 = vmatprep.mubr.f32.mxu0 %v113
    %1969 = vmatmul.mubr.f32.gmra.mrb[0].mxu0 %v112
    %v1970 = vpop.f32.mrb[0].mxu0
    %v1971 = vadd.f32 0.0, %v1970
    %v1972 = vpop.f32.mrb[0].mxu0
    %1973 = vmatprep.mubr.f32.mxu0 %v115
    %1974 = vmatmul.mubr.f32.gmra.mrb[0].mxu0 %v114
    %v1975 = vpop.f32.mrb[0].mxu0
    %v1976 = vadd.f32 0.0, %v1975
    %v1977 = vpop.f32.mrb[0].mxu0
    %1978 = vmatprep.mubr.f32.mxu0 %v117
    %1979 = vmatmul.mubr.f32.gmra.mrb[0].mxu0 %v116
    %v1980 = vpop.f32.mrb[0].mxu0
    %v1981 = vadd.f32 0.0, %v1980
    %v1982 = vpop.f32.mrb[0].mxu0
    %1983 = vmatprep.mubr.f32.mxu0 %v119
    %1984 = vmatmul.mubr.f32.gmra.mrb[0].mxu0 %v118
    %v1985 = vpop.f32.mrb[0].mxu0
    %v1986 = vadd.f32 0.0, %v1985
    %v1987 = vpop.f32.mrb[0].mxu0
    %1988 = vmatprep.mubr.f32.mxu0 %v121
    %1989 = vmatmul.mubr.f32.gmra.mrb[0].mxu0 %v120
    %v1990 = vpop.f32.mrb[0].mxu0
    %v1991 = vadd.f32 0.0, %v1990
    %v1992 = vpop.f32.mrb[0].mxu0
    %1993 = vdwg.mxu0
    %s1994 = scalar_lea.vmem [#allocation6], 384
    %v1995 = vld [vmem:[%s1994] sm:$0xff]
    %v1996 = vld [vmem:[%s1994 + $0x8] sm:$0xff]
    %v1997 = vld [vmem:[%s1994 + $0x10] sm:$0xff]
    %v1998 = vld [vmem:[%s1994 + $0x18] sm:$0xff]
    %v1999 = vld [vmem:[%s1994 + $0x20] sm:$0xff]
    %v2000 = vld [vmem:[%s1994 + $0x28] sm:$0xff]
    %v2001 = vld [vmem:[%s1994 + $0x30] sm:$0xff]
    %v2002 = vld [vmem:[%s1994 + $0x38] sm:$0xff]
    %v2003 = vld [vmem:[%s1994 + $0x40] sm:$0xff]
    %v2004 = vld [vmem:[%s1994 + $0x48] sm:$0xff]
    %v2005 = vld [vmem:[%s1994 + $0x50] sm:$0xff]
    %v2006 = vld [vmem:[%s1994 + $0x58] sm:$0xff]
    %v2007 = vld [vmem:[%s1994 + $0x60] sm:$0xff]
    %v2008 = vld [vmem:[%s1994 + $0x68] sm:$0xff]
    %v2009 = vld [vmem:[%s1994 + $0x70] sm:$0xff]
    %v2010 = vld [vmem:[%s1994 + $0x78] sm:$0xff]
    %s2011 = scalar_lea.vmem %s3, 3
    %v2012 = vld [vmem:[%s2011] sm:$0x1]
    %v2014 = vlaneseq
    %v2015 = vshrl.u32 %v2014, 7
    %v2016 = vsub.s32 0, %v2015
    %v2017 = vrot.slane %v2012, %v2016
    %2019 = vmatprep.subr.mxu0 0.0
    %2020 = vmatpush1.msra.mxu0 %v1995
    %2021 = vmatprep.subr.mxu0 0.0
    %2022 = vmatpush1.msra.mxu0 %v1996
    %2023 = vmatprep.subr.mxu0 0.0
    %2024 = vmatpush1.msra.mxu0 %v1997
    %2025 = vmatprep.subr.mxu0 0.0
    %2026 = vmatpush1.msra.mxu0 %v1998
    %2027 = vmatprep.subr.mxu0 0.0
    %2028 = vmatpush1.msra.mxu0 %v1999
    %2029 = vmatprep.subr.mxu0 0.0
    %2030 = vmatpush1.msra.mxu0 %v2000
    %2031 = vmatprep.subr.mxu0 0.0
    %2032 = vmatpush1.msra.mxu0 %v2001
    %2033 = vmatprep.subr.mxu0 0.0
    %2034 = vmatpush1.msra.mxu0 %v2002
    %2035 = vmatprep.subr.mxu0 0.0
    %2036 = vmatpush1.msra.mxu0 %v2003
    %2037 = vmatprep.subr.mxu0 0.0
    %2038 = vmatpush1.msra.mxu0 %v2004
    %2039 = vmatprep.subr.mxu0 0.0
    %2040 = vmatpush1.msra.mxu0 %v2005
    %2041 = vmatprep.subr.mxu0 0.0
    %2042 = vmatpush1.msra.mxu0 %v2006
    %2043 = vmatprep.subr.mxu0 0.0
    %2044 = vmatpush1.msra.mxu0 %v2007
    %2045 = vmatprep.subr.mxu0 0.0
    %2046 = vmatpush1.msra.mxu0 %v2008
    %2047 = vmatprep.subr.mxu0 0.0
    %2048 = vmatpush1.msra.mxu0 %v2009
    %2049 = vmatprep.subr.mxu0 0.0
    %2050 = vmatpush1.msra.mxu0 %v2010
    %2051 = vmatprep.subr.mxu0 0.0
    %2052 = vmatpush1.msra.mxu0 0.0
    %2053 = vmatprep.subr.mxu0 0.0
    %2054 = vmatpush1.msra.mxu0 0.0
    %2055 = vmatprep.subr.mxu0 0.0
    %2056 = vmatpush1.msra.mxu0 0.0
    %2057 = vmatprep.subr.mxu0 0.0
    %2058 = vmatpush1.msra.mxu0 0.0
    %2059 = vmatprep.subr.mxu0 0.0
    %2060 = vmatpush1.msra.mxu0 0.0
    %2061 = vmatprep.subr.mxu0 0.0
    %2062 = vmatpush1.msra.mxu0 0.0
    %2063 = vmatprep.subr.mxu0 0.0
    %2064 = vmatpush1.msra.mxu0 0.0
    %2065 = vmatprep.subr.mxu0 0.0
    %2066 = vmatpush1.msra.mxu0 0.0
    %2067 = vmatprep.subr.mxu0 0.0
    %2068 = vmatpush1.msra.mxu0 0.0
    %2069 = vmatprep.subr.mxu0 0.0
    %2070 = vmatpush1.msra.mxu0 0.0
    %2071 = vmatprep.subr.mxu0 0.0
    %2072 = vmatpush1.msra.mxu0 0.0
    %2073 = vmatprep.subr.mxu0 0.0
    %2074 = vmatpush1.msra.mxu0 0.0
    %2075 = vmatprep.subr.mxu0 0.0
    %2076 = vmatpush1.msra.mxu0 0.0
    %2077 = vmatprep.subr.mxu0 0.0
    %2078 = vmatpush1.msra.mxu0 0.0
    %2079 = vmatprep.subr.mxu0 0.0
    %2080 = vmatpush1.msra.mxu0 0.0
    %2081 = vmatprep.subr.mxu0 0.0
    %2082 = vmatpush1.msra.mxu0 0.0
    %2083 = vmatprep.mubr.f32.mxu0 0.0
    %2084 = vmatmul.mubr.f32.gmra.mrb[0].mxu0 %v1836
    %v2085 = vpop.f32.mrb[0].mxu0
    %v2086 = vadd.f32 %v2017, %v2085
    %v2087 = vpop.f32.mrb[0].mxu0
    %2088 = vmatprep.mubr.f32.mxu0 0.0
    %2089 = vmatmul.mubr.f32.gmra.mrb[0].mxu0 %v1841
    %v2090 = vpop.f32.mrb[0].mxu0
    %v2091 = vadd.f32 %v2017, %v2090
    %v2092 = vpop.f32.mrb[0].mxu0
    %2093 = vmatprep.mubr.f32.mxu0 0.0
    %2094 = vmatmul.mubr.f32.gmra.mrb[0].mxu0 %v1846
    %v2095 = vpop.f32.mrb[0].mxu0
    %v2096 = vadd.f32 %v2017, %v2095
    %v2097 = vpop.f32.mrb[0].mxu0
    %2098 = vmatprep.mubr.f32.mxu0 0.0
    %2099 = vmatmul.mubr.f32.gmra.mrb[0].mxu0 %v1851
    %v2100 = vpop.f32.mrb[0].mxu0
    %v2101 = vadd.f32 %v2017, %v2100
    %v2102 = vpop.f32.mrb[0].mxu0
    %2103 = vmatprep.mubr.f32.mxu0 0.0
    %2104 = vmatmul.mubr.f32.gmra.mrb[0].mxu0 %v1856
    %v2105 = vpop.f32.mrb[0].mxu0
    %v2106 = vadd.f32 %v2017, %v2105
    %v2107 = vpop.f32.mrb[0].mxu0
    %2108 = vmatprep.mubr.f32.mxu0 0.0
    %2109 = vmatmul.mubr.f32.gmra.mrb[0].mxu0 %v1861
    %v2110 = vpop.f32.mrb[0].mxu0
    %v2111 = vadd.f32 %v2017, %v2110
    %v2112 = vpop.f32.mrb[0].mxu0
    %2113 = vmatprep.mubr.f32.mxu0 0.0
    %2114 = vmatmul.mubr.f32.gmra.mrb[0].mxu0 %v1866
    %v2115 = vpop.f32.mrb[0].mxu0
    %v2116 = vadd.f32 %v2017, %v2115
    %v2117 = vpop.f32.mrb[0].mxu0
    %2118 = vmatprep.mubr.f32.mxu0 0.0
    %2119 = vmatmul.mubr.f32.gmra.mrb[0].mxu0 %v1871
    %v2120 = vpop.f32.mrb[0].mxu0
    %v2121 = vadd.f32 %v2017, %v2120
    %v2122 = vpop.f32.mrb[0].mxu0
    %2123 = vmatprep.mubr.f32.mxu0 0.0
    %2124 = vmatmul.mubr.f32.gmra.mrb[0].mxu0 %v1876
    %v2125 = vpop.f32.mrb[0].mxu0
    %v2126 = vadd.f32 %v2017, %v2125
    %v2127 = vpop.f32.mrb[0].mxu0
    %2128 = vmatprep.mubr.f32.mxu0 0.0
    %2129 = vmatmul.mubr.f32.gmra.mrb[0].mxu0 %v1881
    %v2130 = vpop.f32.mrb[0].mxu0
    %v2131 = vadd.f32 %v2017, %v2130
    %v2132 = vpop.f32.mrb[0].mxu0
    %2133 = vmatprep.mubr.f32.mxu0 0.0
    %2134 = vmatmul.mubr.f32.gmra.mrb[0].mxu0 %v1886
    %v2135 = vpop.f32.mrb[0].mxu0
    %v2136 = vadd.f32 %v2017, %v2135
    %v2137 = vpop.f32.mrb[0].mxu0
    %2138 = vmatprep.mubr.f32.mxu0 0.0
    %2139 = vmatmul.mubr.f32.gmra.mrb[0].mxu0 %v1891
    %v2140 = vpop.f32.mrb[0].mxu0
    %v2141 = vadd.f32 %v2017, %v2140
    %v2142 = vpop.f32.mrb[0].mxu0
    %2143 = vmatprep.mubr.f32.mxu0 0.0
    %2144 = vmatmul.mubr.f32.gmra.mrb[0].mxu0 %v1896
    %v2145 = vpop.f32.mrb[0].mxu0
    %v2146 = vadd.f32 %v2017, %v2145
    %v2147 = vpop.f32.mrb[0].mxu0
    %2148 = vmatprep.mubr.f32.mxu0 0.0
    %2149 = vmatmul.mubr.f32.gmra.mrb[0].mxu0 %v1901
    %v2150 = vpop.f32.mrb[0].mxu0
    %v2151 = vadd.f32 %v2017, %v2150
    %v2152 = vpop.f32.mrb[0].mxu0
    %2153 = vmatprep.mubr.f32.mxu0 0.0
    %2154 = vmatmul.mubr.f32.gmra.mrb[0].mxu0 %v1906
    %v2155 = vpop.f32.mrb[0].mxu0
    %v2156 = vadd.f32 %v2017, %v2155
    %v2157 = vpop.f32.mrb[0].mxu0
    %2158 = vmatprep.mubr.f32.mxu0 0.0
    %2159 = vmatmul.mubr.f32.gmra.mrb[0].mxu0 %v1911
    %v2160 = vpop.f32.mrb[0].mxu0
    %v2161 = vadd.f32 %v2017, %v2160
    %v2162 = vpop.f32.mrb[0].mxu0
    %2163 = vmatprep.mubr.f32.mxu0 0.0
    %2164 = vmatmul.mubr.f32.gmra.mrb[0].mxu0 %v1916
    %v2165 = vpop.f32.mrb[0].mxu0
    %v2166 = vadd.f32 %v2017, %v2165
    %v2167 = vpop.f32.mrb[0].mxu0
    %2168 = vmatprep.mubr.f32.mxu0 0.0
    %2169 = vmatmul.mubr.f32.gmra.mrb[0].mxu0 %v1921
    %v2170 = vpop.f32.mrb[0].mxu0
    %v2171 = vadd.f32 %v2017, %v2170
    %v2172 = vpop.f32.mrb[0].mxu0
    %2173 = vmatprep.mubr.f32.mxu0 0.0
    %2174 = vmatmul.mubr.f32.gmra.mrb[0].mxu0 %v1926
    %v2175 = vpop.f32.mrb[0].mxu0
    %v2176 = vadd.f32 %v2017, %v2175
    %v2177 = vpop.f32.mrb[0].mxu0
    %2178 = vmatprep.mubr.f32.mxu0 0.0
    %2179 = vmatmul.mubr.f32.gmra.mrb[0].mxu0 %v1931
    %v2180 = vpop.f32.mrb[0].mxu0
    %v2181 = vadd.f32 %v2017, %v2180
    %v2182 = vpop.f32.mrb[0].mxu0
    %2183 = vmatprep.mubr.f32.mxu0 0.0
    %2184 = vmatmul.mubr.f32.gmra.mrb[0].mxu0 %v1936
    %v2185 = vpop.f32.mrb[0].mxu0
    %v2186 = vadd.f32 %v2017, %v2185
    %v2187 = vpop.f32.mrb[0].mxu0
    %2188 = vmatprep.mubr.f32.mxu0 0.0
    %2189 = vmatmul.mubr.f32.gmra.mrb[0].mxu0 %v1941
    %v2190 = vpop.f32.mrb[0].mxu0
    %v2191 = vadd.f32 %v2017, %v2190
    %v2192 = vpop.f32.mrb[0].mxu0
    %2193 = vmatprep.mubr.f32.mxu0 0.0
    %2194 = vmatmul.mubr.f32.gmra.mrb[0].mxu0 %v1946
    %v2195 = vpop.f32.mrb[0].mxu0
    %v2196 = vadd.f32 %v2017, %v2195
    %v2197 = vpop.f32.mrb[0].mxu0
    %2198 = vmatprep.mubr.f32.mxu0 0.0
    %2199 = vmatmul.mubr.f32.gmra.mrb[0].mxu0 %v1951
    %v2200 = vpop.f32.mrb[0].mxu0
    %v2201 = vadd.f32 %v2017, %v2200
    %v2202 = vpop.f32.mrb[0].mxu0
    %2203 = vmatprep.mubr.f32.mxu0 0.0
    %2204 = vmatmul.mubr.f32.gmra.mrb[0].mxu0 %v1956
    %v2205 = vpop.f32.mrb[0].mxu0
    %v2206 = vadd.f32 %v2017, %v2205
    %v2207 = vpop.f32.mrb[0].mxu0
    %2208 = vmatprep.mubr.f32.mxu0 0.0
    %2209 = vmatmul.mubr.f32.gmra.mrb[0].mxu0 %v1961
    %v2210 = vpop.f32.mrb[0].mxu0
    %v2211 = vadd.f32 %v2017, %v2210
    %v2212 = vpop.f32.mrb[0].mxu0
    %2213 = vmatprep.mubr.f32.mxu0 0.0
    %2214 = vmatmul.mubr.f32.gmra.mrb[0].mxu0 %v1966
    %v2215 = vpop.f32.mrb[0].mxu0
    %v2216 = vadd.f32 %v2017, %v2215
    %v2217 = vpop.f32.mrb[0].mxu0
    %2218 = vmatprep.mubr.f32.mxu0 0.0
    %2219 = vmatmul.mubr.f32.gmra.mrb[0].mxu0 %v1971
    %v2220 = vpop.f32.mrb[0].mxu0
    %v2221 = vadd.f32 %v2017, %v2220
    %v2222 = vpop.f32.mrb[0].mxu0
    %2223 = vmatprep.mubr.f32.mxu0 0.0
    %2224 = vmatmul.mubr.f32.gmra.mrb[0].mxu0 %v1976
    %v2225 = vpop.f32.mrb[0].mxu0
    %v2226 = vadd.f32 %v2017, %v2225
    %v2227 = vpop.f32.mrb[0].mxu0
    %2228 = vmatprep.mubr.f32.mxu0 0.0
    %2229 = vmatmul.mubr.f32.gmra.mrb[0].mxu0 %v1981
    %v2230 = vpop.f32.mrb[0].mxu0
    %v2231 = vadd.f32 %v2017, %v2230
    %v2232 = vpop.f32.mrb[0].mxu0
    %2233 = vmatprep.mubr.f32.mxu0 0.0
    %2234 = vmatmul.mubr.f32.gmra.mrb[0].mxu0 %v1986
    %v2235 = vpop.f32.mrb[0].mxu0
    %v2236 = vadd.f32 %v2017, %v2235
    %v2237 = vpop.f32.mrb[0].mxu0
    %2238 = vmatprep.mubr.f32.mxu0 0.0
    %2239 = vmatmul.mubr.f32.gmra.mrb[0].mxu0 %v1991
    %v2240 = vpop.f32.mrb[0].mxu0
    %v2241 = vadd.f32 %v2017, %v2240
    %v2242 = vpop.f32.mrb[0].mxu0
    %2243 = vdwg.mxu0
    %v2244 = vmax.f32 %v2086, 0.0
    %v2245 = vmax.f32 %v2091, 0.0
    %v2246 = vmax.f32 %v2096, 0.0
    %v2247 = vmax.f32 %v2101, 0.0
    %v2248 = vmax.f32 %v2106, 0.0
    %v2249 = vmax.f32 %v2111, 0.0
    %v2250 = vmax.f32 %v2116, 0.0
    %v2251 = vmax.f32 %v2121, 0.0
    %v2252 = vmax.f32 %v2126, 0.0
    %v2253 = vmax.f32 %v2131, 0.0
    %v2254 = vmax.f32 %v2136, 0.0
    %v2255 = vmax.f32 %v2141, 0.0
    %v2256 = vmax.f32 %v2146, 0.0
    %v2257 = vmax.f32 %v2151, 0.0
    %v2258 = vmax.f32 %v2156, 0.0
    %v2259 = vmax.f32 %v2161, 0.0
    %v2260 = vmax.f32 %v2166, 0.0
    %v2261 = vmax.f32 %v2171, 0.0
    %v2262 = vmax.f32 %v2176, 0.0
    %v2263 = vmax.f32 %v2181, 0.0
    %v2264 = vmax.f32 %v2186, 0.0
    %v2265 = vmax.f32 %v2191, 0.0
    %v2266 = vmax.f32 %v2196, 0.0
    %v2267 = vmax.f32 %v2201, 0.0
    %v2268 = vmax.f32 %v2206, 0.0
    %v2269 = vmax.f32 %v2211, 0.0
    %v2270 = vmax.f32 %v2216, 0.0
    %v2271 = vmax.f32 %v2221, 0.0
    %v2272 = vmax.f32 %v2226, 0.0
    %v2273 = vmax.f32 %v2231, 0.0
    %v2274 = vmax.f32 %v2236, 0.0
    %v2275 = vmax.f32 %v2241, 0.0
    %s2276 = scalar_lea.vmem [#allocation6], 512
    %v2277 = vld [vmem:[%s2276] sm:$0xff]
    %v2278 = vld [vmem:[%s2276 + $0x8] sm:$0xff]
    %v2279 = vld [vmem:[%s2276 + $0x10] sm:$0xff]
    %v2280 = vld [vmem:[%s2276 + $0x18] sm:$0xff]
    %v2281 = vld [vmem:[%s2276 + $0x20] sm:$0xff]
    %v2282 = vld [vmem:[%s2276 + $0x28] sm:$0xff]
    %v2283 = vld [vmem:[%s2276 + $0x30] sm:$0xff]
    %v2284 = vld [vmem:[%s2276 + $0x38] sm:$0xff]
    %v2285 = vld [vmem:[%s2276 + $0x40] sm:$0xff]
    %v2286 = vld [vmem:[%s2276 + $0x48] sm:$0xff]
    %v2287 = vld [vmem:[%s2276 + $0x50] sm:$0xff]
    %v2288 = vld [vmem:[%s2276 + $0x58] sm:$0xff]
    %v2289 = vld [vmem:[%s2276 + $0x60] sm:$0xff]
    %v2290 = vld [vmem:[%s2276 + $0x68] sm:$0xff]
    %v2291 = vld [vmem:[%s2276 + $0x70] sm:$0xff]
    %v2292 = vld [vmem:[%s2276 + $0x78] sm:$0xff]
    %s2293 = scalar_lea.vmem %s3, 4
    %v2294 = vld [vmem:[%s2293] sm:$0x1]
    %v2296 = vlaneseq
    %v2297 = vshrl.u32 %v2296, 7
    %v2298 = vsub.s32 0, %v2297
    %v2299 = vrot.slane %v2294, %v2298
    %2301 = vmatprep.subr.mxu0 0.0
    %2302 = vmatpush1.msra.mxu0 %v2277
    %2303 = vmatprep.subr.mxu0 0.0
    %2304 = vmatpush1.msra.mxu0 %v2278
    %2305 = vmatprep.subr.mxu0 0.0
    %2306 = vmatpush1.msra.mxu0 %v2279
    %2307 = vmatprep.subr.mxu0 0.0
    %2308 = vmatpush1.msra.mxu0 %v2280
    %2309 = vmatprep.subr.mxu0 0.0
    %2310 = vmatpush1.msra.mxu0 %v2281
    %2311 = vmatprep.subr.mxu0 0.0
    %2312 = vmatpush1.msra.mxu0 %v2282
    %2313 = vmatprep.subr.mxu0 0.0
    %2314 = vmatpush1.msra.mxu0 %v2283
    %2315 = vmatprep.subr.mxu0 0.0
    %2316 = vmatpush1.msra.mxu0 %v2284
    %2317 = vmatprep.subr.mxu0 0.0
    %2318 = vmatpush1.msra.mxu0 %v2285
    %2319 = vmatprep.subr.mxu0 0.0
    %2320 = vmatpush1.msra.mxu0 %v2286
    %2321 = vmatprep.subr.mxu0 0.0
    %2322 = vmatpush1.msra.mxu0 %v2287
    %2323 = vmatprep.subr.mxu0 0.0
    %2324 = vmatpush1.msra.mxu0 %v2288
    %2325 = vmatprep.subr.mxu0 0.0
    %2326 = vmatpush1.msra.mxu0 %v2289
    %2327 = vmatprep.subr.mxu0 0.0
    %2328 = vmatpush1.msra.mxu0 %v2290
    %2329 = vmatprep.subr.mxu0 0.0
    %2330 = vmatpush1.msra.mxu0 %v2291
    %2331 = vmatprep.subr.mxu0 0.0
    %2332 = vmatpush1.msra.mxu0 %v2292
    %2333 = vmatprep.subr.mxu0 0.0
    %2334 = vmatpush1.msra.mxu0 0.0
    %2335 = vmatprep.subr.mxu0 0.0
    %2336 = vmatpush1.msra.mxu0 0.0
    %2337 = vmatprep.subr.mxu0 0.0
    %2338 = vmatpush1.msra.mxu0 0.0
    %2339 = vmatprep.subr.mxu0 0.0
    %2340 = vmatpush1.msra.mxu0 0.0
    %2341 = vmatprep.subr.mxu0 0.0
    %2342 = vmatpush1.msra.mxu0 0.0
    %2343 = vmatprep.subr.mxu0 0.0
    %2344 = vmatpush1.msra.mxu0 0.0
    %2345 = vmatprep.subr.mxu0 0.0
    %2346 = vmatpush1.msra.mxu0 0.0
    %2347 = vmatprep.subr.mxu0 0.0
    %2348 = vmatpush1.msra.mxu0 0.0
    %2349 = vmatprep.subr.mxu0 0.0
    %2350 = vmatpush1.msra.mxu0 0.0
    %2351 = vmatprep.subr.mxu0 0.0
    %2352 = vmatpush1.msra.mxu0 0.0
    %2353 = vmatprep.subr.mxu0 0.0
    %2354 = vmatpush1.msra.mxu0 0.0
    %2355 = vmatprep.subr.mxu0 0.0
    %2356 = vmatpush1.msra.mxu0 0.0
    %2357 = vmatprep.subr.mxu0 0.0
    %2358 = vmatpush1.msra.mxu0 0.0
    %2359 = vmatprep.subr.mxu0 0.0
    %2360 = vmatpush1.msra.mxu0 0.0
    %2361 = vmatprep.subr.mxu0 0.0
    %2362 = vmatpush1.msra.mxu0 0.0
    %2363 = vmatprep.subr.mxu0 0.0
    %2364 = vmatpush1.msra.mxu0 0.0
    %2365 = vmatprep.mubr.f32.mxu0 0.0
    %2366 = vmatmul.mubr.f32.gmra.mrb[0].mxu0 %v2244
    %v2367 = vpop.f32.mrb[0].mxu0
    %v2368 = vadd.f32 %v2299, %v2367
    %v2369 = vpop.f32.mrb[0].mxu0
    %2370 = vmatprep.mubr.f32.mxu0 0.0
    %2371 = vmatmul.mubr.f32.gmra.mrb[0].mxu0 %v2245
    %v2372 = vpop.f32.mrb[0].mxu0
    %v2373 = vadd.f32 %v2299, %v2372
    %v2374 = vpop.f32.mrb[0].mxu0
    %2375 = vmatprep.mubr.f32.mxu0 0.0
    %2376 = vmatmul.mubr.f32.gmra.mrb[0].mxu0 %v2246
    %v2377 = vpop.f32.mrb[0].mxu0
    %v2378 = vadd.f32 %v2299, %v2377
    %v2379 = vpop.f32.mrb[0].mxu0
    %2380 = vmatprep.mubr.f32.mxu0 0.0
    %2381 = vmatmul.mubr.f32.gmra.mrb[0].mxu0 %v2247
    %v2382 = vpop.f32.mrb[0].mxu0
    %v2383 = vadd.f32 %v2299, %v2382
    %v2384 = vpop.f32.mrb[0].mxu0
    %2385 = vmatprep.mubr.f32.mxu0 0.0
    %2386 = vmatmul.mubr.f32.gmra.mrb[0].mxu0 %v2248
    %v2387 = vpop.f32.mrb[0].mxu0
    %v2388 = vadd.f32 %v2299, %v2387
    %v2389 = vpop.f32.mrb[0].mxu0
    %2390 = vmatprep.mubr.f32.mxu0 0.0
    %2391 = vmatmul.mubr.f32.gmra.mrb[0].mxu0 %v2249
    %v2392 = vpop.f32.mrb[0].mxu0
    %v2393 = vadd.f32 %v2299, %v2392
    %v2394 = vpop.f32.mrb[0].mxu0
    %2395 = vmatprep.mubr.f32.mxu0 0.0
    %2396 = vmatmul.mubr.f32.gmra.mrb[0].mxu0 %v2250
    %v2397 = vpop.f32.mrb[0].mxu0
    %v2398 = vadd.f32 %v2299, %v2397
    %v2399 = vpop.f32.mrb[0].mxu0
    %2400 = vmatprep.mubr.f32.mxu0 0.0
    %2401 = vmatmul.mubr.f32.gmra.mrb[0].mxu0 %v2251
    %v2402 = vpop.f32.mrb[0].mxu0
    %v2403 = vadd.f32 %v2299, %v2402
    %v2404 = vpop.f32.mrb[0].mxu0
    %2405 = vmatprep.mubr.f32.mxu0 0.0
    %2406 = vmatmul.mubr.f32.gmra.mrb[0].mxu0 %v2252
    %v2407 = vpop.f32.mrb[0].mxu0
    %v2408 = vadd.f32 %v2299, %v2407
    %v2409 = vpop.f32.mrb[0].mxu0
    %2410 = vmatprep.mubr.f32.mxu0 0.0
    %2411 = vmatmul.mubr.f32.gmra.mrb[0].mxu0 %v2253
    %v2412 = vpop.f32.mrb[0].mxu0
    %v2413 = vadd.f32 %v2299, %v2412
    %v2414 = vpop.f32.mrb[0].mxu0
    %2415 = vmatprep.mubr.f32.mxu0 0.0
    %2416 = vmatmul.mubr.f32.gmra.mrb[0].mxu0 %v2254
    %v2417 = vpop.f32.mrb[0].mxu0
    %v2418 = vadd.f32 %v2299, %v2417
    %v2419 = vpop.f32.mrb[0].mxu0
    %2420 = vmatprep.mubr.f32.mxu0 0.0
    %2421 = vmatmul.mubr.f32.gmra.mrb[0].mxu0 %v2255
    %v2422 = vpop.f32.mrb[0].mxu0
    %v2423 = vadd.f32 %v2299, %v2422
    %v2424 = vpop.f32.mrb[0].mxu0
    %2425 = vmatprep.mubr.f32.mxu0 0.0
    %2426 = vmatmul.mubr.f32.gmra.mrb[0].mxu0 %v2256
    %v2427 = vpop.f32.mrb[0].mxu0
    %v2428 = vadd.f32 %v2299, %v2427
    %v2429 = vpop.f32.mrb[0].mxu0
    %2430 = vmatprep.mubr.f32.mxu0 0.0
    %2431 = vmatmul.mubr.f32.gmra.mrb[0].mxu0 %v2257
    %v2432 = vpop.f32.mrb[0].mxu0
    %v2433 = vadd.f32 %v2299, %v2432
    %v2434 = vpop.f32.mrb[0].mxu0
    %2435 = vmatprep.mubr.f32.mxu0 0.0
    %2436 = vmatmul.mubr.f32.gmra.mrb[0].mxu0 %v2258
    %v2437 = vpop.f32.mrb[0].mxu0
    %v2438 = vadd.f32 %v2299, %v2437
    %v2439 = vpop.f32.mrb[0].mxu0
    %2440 = vmatprep.mubr.f32.mxu0 0.0
    %2441 = vmatmul.mubr.f32.gmra.mrb[0].mxu0 %v2259
    %v2442 = vpop.f32.mrb[0].mxu0
    %v2443 = vadd.f32 %v2299, %v2442
    %v2444 = vpop.f32.mrb[0].mxu0
    %2445 = vmatprep.mubr.f32.mxu0 0.0
    %2446 = vmatmul.mubr.f32.gmra.mrb[0].mxu0 %v2260
    %v2447 = vpop.f32.mrb[0].mxu0
    %v2448 = vadd.f32 %v2299, %v2447
    %v2449 = vpop.f32.mrb[0].mxu0
    %2450 = vmatprep.mubr.f32.mxu0 0.0
    %2451 = vmatmul.mubr.f32.gmra.mrb[0].mxu0 %v2261
    %v2452 = vpop.f32.mrb[0].mxu0
    %v2453 = vadd.f32 %v2299, %v2452
    %v2454 = vpop.f32.mrb[0].mxu0
    %2455 = vmatprep.mubr.f32.mxu0 0.0
    %2456 = vmatmul.mubr.f32.gmra.mrb[0].mxu0 %v2262
    %v2457 = vpop.f32.mrb[0].mxu0
    %v2458 = vadd.f32 %v2299, %v2457
    %v2459 = vpop.f32.mrb[0].mxu0
    %2460 = vmatprep.mubr.f32.mxu0 0.0
    %2461 = vmatmul.mubr.f32.gmra.mrb[0].mxu0 %v2263
    %v2462 = vpop.f32.mrb[0].mxu0
    %v2463 = vadd.f32 %v2299, %v2462
    %v2464 = vpop.f32.mrb[0].mxu0
    %2465 = vmatprep.mubr.f32.mxu0 0.0
    %2466 = vmatmul.mubr.f32.gmra.mrb[0].mxu0 %v2264
    %v2467 = vpop.f32.mrb[0].mxu0
    %v2468 = vadd.f32 %v2299, %v2467
    %v2469 = vpop.f32.mrb[0].mxu0
    %2470 = vmatprep.mubr.f32.mxu0 0.0
    %2471 = vmatmul.mubr.f32.gmra.mrb[0].mxu0 %v2265
    %v2472 = vpop.f32.mrb[0].mxu0
    %v2473 = vadd.f32 %v2299, %v2472
    %v2474 = vpop.f32.mrb[0].mxu0
    %2475 = vmatprep.mubr.f32.mxu0 0.0
    %2476 = vmatmul.mubr.f32.gmra.mrb[0].mxu0 %v2266
    %v2477 = vpop.f32.mrb[0].mxu0
    %v2478 = vadd.f32 %v2299, %v2477
    %v2479 = vpop.f32.mrb[0].mxu0
    %2480 = vmatprep.mubr.f32.mxu0 0.0
    %2481 = vmatmul.mubr.f32.gmra.mrb[0].mxu0 %v2267
    %v2482 = vpop.f32.mrb[0].mxu0
    %v2483 = vadd.f32 %v2299, %v2482
    %v2484 = vpop.f32.mrb[0].mxu0
    %2485 = vmatprep.mubr.f32.mxu0 0.0
    %2486 = vmatmul.mubr.f32.gmra.mrb[0].mxu0 %v2268
    %v2487 = vpop.f32.mrb[0].mxu0
    %v2488 = vadd.f32 %v2299, %v2487
    %v2489 = vpop.f32.mrb[0].mxu0
    %2490 = vmatprep.mubr.f32.mxu0 0.0
    %2491 = vmatmul.mubr.f32.gmra.mrb[0].mxu0 %v2269
    %v2492 = vpop.f32.mrb[0].mxu0
    %v2493 = vadd.f32 %v2299, %v2492
    %v2494 = vpop.f32.mrb[0].mxu0
    %2495 = vmatprep.mubr.f32.mxu0 0.0
    %2496 = vmatmul.mubr.f32.gmra.mrb[0].mxu0 %v2270
    %v2497 = vpop.f32.mrb[0].mxu0
    %v2498 = vadd.f32 %v2299, %v2497
    %v2499 = vpop.f32.mrb[0].mxu0
    %2500 = vmatprep.mubr.f32.mxu0 0.0
    %2501 = vmatmul.mubr.f32.gmra.mrb[0].mxu0 %v2271
    %v2502 = vpop.f32.mrb[0].mxu0
    %v2503 = vadd.f32 %v2299, %v2502
    %v2504 = vpop.f32.mrb[0].mxu0
    %2505 = vmatprep.mubr.f32.mxu0 0.0
    %2506 = vmatmul.mubr.f32.gmra.mrb[0].mxu0 %v2272
    %v2507 = vpop.f32.mrb[0].mxu0
    %v2508 = vadd.f32 %v2299, %v2507
    %v2509 = vpop.f32.mrb[0].mxu0
    %2510 = vmatprep.mubr.f32.mxu0 0.0
    %2511 = vmatmul.mubr.f32.gmra.mrb[0].mxu0 %v2273
    %v2512 = vpop.f32.mrb[0].mxu0
    %v2513 = vadd.f32 %v2299, %v2512
    %v2514 = vpop.f32.mrb[0].mxu0
    %2515 = vmatprep.mubr.f32.mxu0 0.0
    %2516 = vmatmul.mubr.f32.gmra.mrb[0].mxu0 %v2274
    %v2517 = vpop.f32.mrb[0].mxu0
    %v2518 = vadd.f32 %v2299, %v2517
    %v2519 = vpop.f32.mrb[0].mxu0
    %2520 = vmatprep.mubr.f32.mxu0 0.0
    %2521 = vmatmul.mubr.f32.gmra.mrb[0].mxu0 %v2275
    %v2522 = vpop.f32.mrb[0].mxu0
    %v2523 = vadd.f32 %v2299, %v2522
    %v2524 = vpop.f32.mrb[0].mxu0
    %2525 = vdwg.mxu0
    %vm2526 = vcmask 64512
    %2527 = vst.msk [vmem:[%s4] sm:$0xff] %vm2526, %v2368
    %2528 = vst.msk [vmem:[%s4 + $0x8] sm:$0xff] %vm2526, %v2373
    %2529 = vst.msk [vmem:[%s4 + $0x10] sm:$0xff] %vm2526, %v2378
    %2530 = vst.msk [vmem:[%s4 + $0x18] sm:$0xff] %vm2526, %v2383
    %2531 = vst.msk [vmem:[%s4 + $0x20] sm:$0xff] %vm2526, %v2388
    %2532 = vst.msk [vmem:[%s4 + $0x28] sm:$0xff] %vm2526, %v2393
    %2533 = vst.msk [vmem:[%s4 + $0x30] sm:$0xff] %vm2526, %v2398
    %2534 = vst.msk [vmem:[%s4 + $0x38] sm:$0xff] %vm2526, %v2403
    %2535 = vst.msk [vmem:[%s4 + $0x40] sm:$0xff] %vm2526, %v2408
    %2536 = vst.msk [vmem:[%s4 + $0x48] sm:$0xff] %vm2526, %v2413
    %2537 = vst.msk [vmem:[%s4 + $0x50] sm:$0xff] %vm2526, %v2418
    %2538 = vst.msk [vmem:[%s4 + $0x58] sm:$0xff] %vm2526, %v2423
    %2539 = vst.msk [vmem:[%s4 + $0x60] sm:$0xff] %vm2526, %v2428
    %2540 = vst.msk [vmem:[%s4 + $0x68] sm:$0xff] %vm2526, %v2433
    %2541 = vst.msk [vmem:[%s4 + $0x70] sm:$0xff] %vm2526, %v2438
    %2542 = vst.msk [vmem:[%s4 + $0x78] sm:$0xff] %vm2526, %v2443
    %2543 = vst.msk [vmem:[%s4 + $0x80] sm:$0xff] %vm2526, %v2448
    %2544 = vst.msk [vmem:[%s4 + $0x88] sm:$0xff] %vm2526, %v2453
    %2545 = vst.msk [vmem:[%s4 + $0x90] sm:$0xff] %vm2526, %v2458
    %2546 = vst.msk [vmem:[%s4 + $0x98] sm:$0xff] %vm2526, %v2463
    %2547 = vst.msk [vmem:[%s4 + $0xa0] sm:$0xff] %vm2526, %v2468
    %2548 = vst.msk [vmem:[%s4 + $0xa8] sm:$0xff] %vm2526, %v2473
    %2549 = vst.msk [vmem:[%s4 + $0xb0] sm:$0xff] %vm2526, %v2478
    %2550 = vst.msk [vmem:[%s4 + $0xb8] sm:$0xff] %vm2526, %v2483
    %2551 = vst.msk [vmem:[%s4 + $0xc0] sm:$0xff] %vm2526, %v2488
    %2552 = vst.msk [vmem:[%s4 + $0xc8] sm:$0xff] %vm2526, %v2493
    %2553 = vst.msk [vmem:[%s4 + $0xd0] sm:$0xff] %vm2526, %v2498
    %2554 = vst.msk [vmem:[%s4 + $0xd8] sm:$0xff] %vm2526, %v2503
    %2555 = vst.msk [vmem:[%s4 + $0xe0] sm:$0xff] %vm2526, %v2508
    %2556 = vst.msk [vmem:[%s4 + $0xe8] sm:$0xff] %vm2526, %v2513
    %2557 = vst.msk [vmem:[%s4 + $0xf0] sm:$0xff] %vm2526, %v2518
    %2558 = vst.msk [vmem:[%s4 + $0xf8] sm:$0xff] %vm2526, %v2523
    // Predicated region
    $region30: #{gcn_forward.1} parent=1 // pred_check
      _
    $region31: #{gcn_forward.1} parent=1 // pred_check_branch
      %2560 = sbr.rel (0) target = $region33
    $region32: #{gcn_forward.1} parent=1 // pred_region
      _
    $region33: #{gcn_forward.1} parent=1 // pred_fallthru
      _
    // Predicated region
    $region34: #{gcn_forward.1} parent=1 // pred_check
      _
    $region35: #{gcn_forward.1} parent=1 // pred_check_branch
      %2562 = sbr.rel (0) target = $region37
    $region36: #{gcn_forward.1} parent=1 // pred_region
      _
    $region37: #{gcn_forward.1} parent=1 // pred_fallthru
      _
    %2563 = vsyncpa [#allocation3], 1
    %2564 = vsyncpa [#allocation5], 1

</llo_original>
